<compile_context>
chip_gen: v5e
topology: v5e:2x2
jax: 0.10.0
libtpu: 0.0.40
codegen_flags: <defaults>
</compile_context>

<pallas_src>
import functools
import math
import warnings

import jax
import jax.numpy as jnp
from jax.experimental import pallas as pl
from jax.experimental.pallas import tpu as pltpu

LN_EPS = 1e-5  # torch.nn.LayerNorm default


def _round_up(v, m):
    return (v + m - 1) // m * m


def _vmem_capacity_bytes(default=64 << 20):
    """Per-core VMEM capacity; conservative 64 MiB (v7x) fallback."""
    try:
        info = pltpu.get_tpu_info()
        return int(getattr(info, "vmem_capacity_bytes", default))
    except Exception:
        return default


def _quantum_kernel(
    x_ref,
    wab_ref, bab_ref,
    wqaka_ref, bqaka_ref,
    wqbkb_ref, bqbkb_ref,
    ga_ref, beta_a_ref, gb_ref, beta_b_ref,
    fb_ref,
    out_ref,
    *, out_features, half_scale,
):
    n = out_features
    mm_dtype = wab_ref.dtype

    x = x_ref[...]

    # Hoist all (1, n) / (1, 2n) row vectors: read once and reuse (JAX does
    # not CSE broadcast_in_dim, so re-reading per use would re-materialize
    # (block_m, n) broadcasts).
    bab = bab_ref[...]
    bqaka = bqaka_ref[...]
    bqbkb = bqbkb_ref[...]
    ga, beta_a = ga_ref[...], beta_a_ref[...]
    gb, beta_b = gb_ref[...], beta_b_ref[...]
    fb = fb_ref[...]

    def layernorm(h, g, b):
        mu = jnp.mean(h, axis=-1, keepdims=True)
        d = h - mu
        var = jnp.mean(d * d, axis=-1, keepdims=True)
        return d * jax.lax.rsqrt(var + LN_EPS) * g + b

    def softmax(h):
        # NOTE: approx reciprocal (EUP slot, ~free) => rows sum to 1 only to
        # ~1e-3; deliberate, documented deviation from the exact reference.
        m = jnp.max(h, axis=-1, keepdims=True)
        e = jnp.exp(h - m)
        return e * pl.reciprocal(jnp.sum(e, axis=-1, keepdims=True), approx=True)

    # Fused matmul 1: [A_pre | B_pre] = x @ [W_a | W_b] + [b_a | b_b]  (f32 acc).
    ab = jnp.dot(x, wab_ref[...], preferred_element_type=jnp.float32) + bab
    A = jnp.clip(layernorm(ab[:, :n], ga, beta_a), -2.0, 2.0)
    B = jnp.clip(layernorm(ab[:, n:], gb, beta_b), -2.0, 2.0)

    # Fused matmul 2: [qa_pre | ka_pre] = A @ [W_qa | W_ka] + [b_qa | b_ka].
    # Consume both halves immediately (short f32 live ranges; A dies here).
    qaka = jnp.dot(A.astype(mm_dtype), wqaka_ref[...],
                   preferred_element_type=jnp.float32) + bqaka
    qa = softmax(qaka[:, :n])
    a_ka = A * jnp.tanh(qaka[:, n:])          # A * ka
    # TODO(synk): on v5e small-n configs the single EUP (2 exp + 2 tanh per
    # output element) can become the binding slot; a VALU polynomial tanh for
    # ka/kb would offload it (softmax exp must stay exact-ish).

    # Fused matmul 3: [qb_pre | kb_pre] = B @ [W_qb | W_kb] + [b_qb | b_kb].
    qbkb = jnp.dot(B.astype(mm_dtype), wqbkb_ref[...],
                   preferred_element_type=jnp.float32) + bqbkb
    qb = softmax(qbkb[:, :n])
    b_kb = B * jnp.tanh(qbkb[:, n:])          # B * kb

    # quer = B + 0.5*scale*(A*qb*ka - B*qa*kb) + f_b   (0.5*scale pre-folded).
    out_ref[...] = (B + half_scale * (qb * a_ka - qa * b_kb) + fb).astype(out_ref.dtype)


def pack_params(params, matmul_dtype=jnp.bfloat16):
    """Concatenate the 6 Linear weights into 3 wide matmul operands (done once,
    wrapper-side — not in the kernel).  Matmul operands default to bf16
    (native bf16 MXU path on v5e/v6e/v7x, half the resident-weight VMEM);
    accumulation and LN/softmax/tanh/epilogue stay f32.  Pass
    matmul_dtype=jnp.float32 for exact-matmul mode.
    TODO(synk): optional fp8 weight path (f32 accumulate) for v7x at very
    large out_features, gated behind an accuracy check."""
    md = jnp.dtype(matmul_dtype)
    cat = lambda a, b: jnp.concatenate([a, b], axis=-1)
    return {
        "wab": cat(params["wa"], params["wb"]).astype(md),
        "bab": cat(params["ba"], params["bb"]).astype(jnp.float32),
        "wqaka": cat(params["wqa"], params["wka"]).astype(md),
        "bqaka": cat(params["bqa"], params["bka"]).astype(jnp.float32),
        "wqbkb": cat(params["wqb"], params["wkb"]).astype(md),
        "bqbkb": cat(params["bqb"], params["bkb"]).astype(jnp.float32),
        "ga": params["ga"], "beta_a": params["beta_a"],
        "gb": params["gb"], "beta_b": params["beta_b"],
        "fb": params["fb"],
    }


def quantum_layer_forward(x, packed, *, block_m=512):
    """x: (batch, in_features). packed: output of pack_params()."""
    batch, in_features = x.shape
    out_features = packed["ga"].shape[1]
    half_scale = 0.5 / math.sqrt(out_features)
    mm_dtype = packed["wab"].dtype
    itemsize = jnp.dtype(mm_dtype).itemsize

    if out_features % 128 != 0:
        warnings.warn(
            "QuantumLayer: out_features is not a multiple of 128; lane-axis "
            "splits/stores leave the lane-dense fast path (correct but slower).")

    # Resident (single-buffered) parameter footprint.
    w_bytes = sum(int(packed[k].size) * itemsize for k in ("wab", "wqaka", "wqbkb"))
    vec_bytes = sum(int(packed[k].size) * 4 for k in
                    ("bab", "bqaka", "bqbkb", "ga", "beta_a", "gb", "beta_b", "fb"))
    resident_bytes = w_bytes + vec_bytes
    vmem_cap = _vmem_capacity_bytes()
    # TODO(synk): if resident bf16 weights exceed ~40-48 MiB (v7x's 64 MiB
    # VMEM), stream the two (out, 2*out) weights over a K axis instead of
    # holding them fully resident (pltpu.emit_pipeline over (tk, 2n) slices,
    # accumulating qaka/qbkb in f32 VMEM scratch before the epilogue).

    # Batch tiling: big tiles amortize the ~0.35us/step grid overhead and keep
    # tall LHS panels on the MXU; shrink for small batches.
    sub = 16 if mm_dtype == jnp.bfloat16 else 8
    block_m = max(sub, min(_round_up(block_m, sub), _round_up(batch, sub)))
    # v7x megacore: prefer >= 2 grid steps when the batch allows it, so both
    # TensorCores get a "parallel" tile (no effect on single-TC v5e/v6e).
    if _round_up(batch, sub) >= 2 * sub:
        block_m = min(block_m, _round_up((batch + 1) // 2, sub))
    # VMEM-aware cap: streamed x/out tiles (double-buffered) + f32 intermediates.
    per_row = (2 * (in_features * itemsize + out_features * 4)
               + (in_features + 12 * out_features) * 4)
    avail = vmem_cap - resident_bytes - (12 << 20)
    if avail > per_row * sub:
        block_m = min(block_m, max(sub, (avail // per_row) // sub * sub))

    padded = _round_up(batch, block_m)
    if padded != batch:
        # TODO(synk): handle the ragged batch tail in-kernel (masked store via
        # a scalar batch size) instead of the wrapper-side pad; the pad and the
        # cast below fuse into a single XLA op today.
        x = jnp.pad(x, ((0, padded - batch), (0, 0)))
    if x.dtype != mm_dtype:
        x = x.astype(mm_dtype)

    grid = (padded // block_m,)
    order = ("wab", "bab", "wqaka", "bqaka", "wqbkb", "bqbkb",
             "ga", "beta_a", "gb", "beta_b", "fb")
    kernel = functools.partial(
        _quantum_kernel, out_features=out_features, half_scale=half_scale)

    def run(single_buffer_params):
        # Grid-invariant specs: params resident in VMEM across all grid steps;
        # single-buffered (Buffered(1)) since the block never changes.
        mode = pl.Buffered(1) if single_buffer_params else None
        full = lambda a: pl.BlockSpec(a.shape, lambda i: (0, 0), pipeline_mode=mode)
        row_in = pl.BlockSpec((block_m, in_features), lambda i: (i, 0))
        row_out = pl.BlockSpec((block_m, out_features), lambda i: (i, 0))
        in_specs = [row_in] + [full(packed[k]) for k in order]

        # Explicit VMEM budget: resident params (x1 or x2 buffers) + streamed
        # x/out tiles + f32 intermediates + headroom, clamped to chip capacity
        # (default scoped limit is only 16/32 MiB; hard 100 MiB would overflow
        # v7x's 64 MiB).
        bufs = 1 if single_buffer_params else 2
        need = bufs * resident_bytes + block_m * per_row + (8 << 20)
        vmem_limit = int(min(vmem_cap - (8 << 20), max(32 << 20, need)))

        return pl.pallas_call(
            kernel,
            out_shape=jax.ShapeDtypeStruct((padded, out_features), jnp.float32),
            grid_spec=pltpu.PrefetchScalarGridSpec(
                num_scalar_prefetch=0,
                grid=grid,
                in_specs=in_specs,
                out_specs=row_out,
            ),
            compiler_params=pltpu.CompilerParams(
                dimension_semantics=("parallel",),
                vmem_limit_bytes=vmem_limit,
            ),
        )(x, *(packed[k] for k in order))

    try:
        out = run(single_buffer_params=True)
    except Exception:
        # Fallback if this JAX build rejects pl.Buffered(1) single-buffering.
        out = run(single_buffer_params=False)

    return out[:batch] if padded != batch else out


def init_params(key, in_features, out_features):
    """Deterministic init matching the module's _init_weights():
    xavier_uniform weights, zero biases, LayerNorm gamma=1 beta=0, f_b=0.
    PyTorch Linear weight is (out, in); stored pre-transposed as (in, out)."""
    def xavier(k, fan_in, fan_out):
        a = math.sqrt(6.0 / (fan_in + fan_out))
        return jax.random.uniform(k, (fan_in, fan_out), jnp.float32, -a, a)

    keys = jax.random.split(key, 6)
    zeros_row = jnp.zeros((1, out_features), jnp.float32)
    ones_row = jnp.ones((1, out_features), jnp.float32)
    return {
        "wa": xavier(keys[0], in_features, out_features), "ba": zeros_row,
        "wb": xavier(keys[1], in_features, out_features), "bb": zeros_row,
        "wqa": xavier(keys[2], out_features, out_features), "bqa": zeros_row,
        "wqb": xavier(keys[3], out_features, out_features), "bqb": zeros_row,
        "wka": xavier(keys[4], out_features, out_features), "bka": zeros_row,
        "wkb": xavier(keys[5], out_features, out_features), "bkb": zeros_row,
        "ga": ones_row, "beta_a": zeros_row,
        "gb": ones_row, "beta_b": zeros_row,
        "fb": zeros_row,
    }


def _reference_forward(x, params):
    """Pure-JAX reference of the PyTorch forward (eval-mode dropout), using the
    UNFUSED per-Linear weights (validates the wrapper-side weight fusion)."""
    out_features = params["wa"].shape[1]
    scale = 1.0 / math.sqrt(out_features)

    def lin(w, b, h):
        return h @ w + b

    def ln(h, g, b):
        mu = jnp.mean(h, -1, keepdims=True)
        var = jnp.mean((h - mu) ** 2, -1, keepdims=True)
        return (h - mu) / jnp.sqrt(var + LN_EPS) * g + b

    A = jnp.clip(ln(lin(params["wa"], params["ba"], x), params["ga"], params["beta_a"]), -2, 2)
    B = jnp.clip(ln(lin(params["wb"], params["bb"], x), params["gb"], params["beta_b"]), -2, 2)
    qa = jax.nn.softmax(lin(params["wqa"], params["bqa"], A), axis=1)
    qb = jax.nn.softmax(lin(params["wqb"], params["bqb"], B), axis=1)
    ka = jnp.tanh(lin(params["wka"], params["bka"], A))
    kb = jnp.tanh(lin(params["wkb"], params["bkb"], B))
    qi = scale * (A * qb * ka - B * qa * kb)
    return B + 0.5 * qi + params["fb"]


if __name__ == "__main__":
    batch, in_features, out_features = 16, 32, 128

    key = jax.random.PRNGKey(0)
    k_x, k_p = jax.random.split(key)
    x = jax.random.normal(k_x, (batch, in_features), jnp.float32)
    params = init_params(k_p, in_features, out_features)
    ref = _reference_forward(x, params)

    # Default path: bf16 matmul operands, f32 accumulate / LN / softmax / tanh.
    out_bf16 = jax.block_until_ready(quantum_layer_forward(x, pack_params(params)))
    assert out_bf16.shape == (batch, out_features)
    assert jnp.allclose(out_bf16, ref, atol=5e-2, rtol=5e-2), "bf16 path mismatch vs reference"

    # Exact f32-matmul path (also exercises a multi-step grid: block_m shrinks
    # to give >= 2 parallel batch tiles).
    out_f32 = jax.block_until_ready(
        quantum_layer_forward(x, pack_params(params, matmul_dtype=jnp.float32)))
    assert out_f32.shape == (batch, out_features)
    assert jnp.allclose(out_f32, ref, atol=2e-3, rtol=2e-3), "f32 path mismatch vs reference"

    print("KERNEL_OK")
</pallas_src>

<mosaic_0001>
module attributes {stable_mosaic.version = 11 : i64} {
  func.func @_quantum_kernel(%arg0: i32, %arg1: memref<16x32xbf16, #tpu.memory_space<vmem>>, %arg2: memref<32x256xbf16, #tpu.memory_space<vmem>>, %arg3: memref<1x256xf32, #tpu.memory_space<vmem>>, %arg4: memref<128x256xbf16, #tpu.memory_space<vmem>>, %arg5: memref<1x256xf32, #tpu.memory_space<vmem>>, %arg6: memref<128x256xbf16, #tpu.memory_space<vmem>>, %arg7: memref<1x256xf32, #tpu.memory_space<vmem>>, %arg8: memref<1x128xf32, #tpu.memory_space<vmem>>, %arg9: memref<1x128xf32, #tpu.memory_space<vmem>>, %arg10: memref<1x128xf32, #tpu.memory_space<vmem>>, %arg11: memref<1x128xf32, #tpu.memory_space<vmem>>, %arg12: memref<1x128xf32, #tpu.memory_space<vmem>>, %arg13: memref<16x128xf32, #tpu.memory_space<vmem>>) attributes {dimension_semantics = [#tpu.dimension_semantics<parallel>], iteration_bounds = array<i64: 1>, scalar_prefetch = 0 : i64, scratch_operands = 0 : i64, tpu.core_type = #tpu.core_type<tc>, window_params = [{transform_indices = @transform_0, window_bounds = array<i64: 16, 32>}, {pipeline_mode = #tpu.pipeline_mode<synchronous>, transform_indices = @transform_1, window_bounds = array<i64: 32, 256>}, {pipeline_mode = #tpu.pipeline_mode<synchronous>, transform_indices = @transform_2, window_bounds = array<i64: 1, 256>}, {pipeline_mode = #tpu.pipeline_mode<synchronous>, transform_indices = @transform_3, window_bounds = array<i64: 128, 256>}, {pipeline_mode = #tpu.pipeline_mode<synchronous>, transform_indices = @transform_4, window_bounds = array<i64: 1, 256>}, {pipeline_mode = #tpu.pipeline_mode<synchronous>, transform_indices = @transform_5, window_bounds = array<i64: 128, 256>}, {pipeline_mode = #tpu.pipeline_mode<synchronous>, transform_indices = @transform_6, window_bounds = array<i64: 1, 256>}, {pipeline_mode = #tpu.pipeline_mode<synchronous>, transform_indices = @transform_7, window_bounds = array<i64: 1, 128>}, {pipeline_mode = #tpu.pipeline_mode<synchronous>, transform_indices = @transform_8, window_bounds = array<i64: 1, 128>}, {pipeline_mode = #tpu.pipeline_mode<synchronous>, transform_indices = @transform_9, window_bounds = array<i64: 1, 128>}, {pipeline_mode = #tpu.pipeline_mode<synchronous>, transform_indices = @transform_10, window_bounds = array<i64: 1, 128>}, {pipeline_mode = #tpu.pipeline_mode<synchronous>, transform_indices = @transform_11, window_bounds = array<i64: 1, 128>}, {transform_indices = @transform_12, window_bounds = array<i64: 16, 128>}]} {
    %c0 = arith.constant 0 : index
    %c0_0 = arith.constant 0 : index
    %0 = vector.load %arg1[%c0, %c0_0] : memref<16x32xbf16, #tpu.memory_space<vmem>>, vector<16x32xbf16>
    %c0_1 = arith.constant 0 : index
    %c0_2 = arith.constant 0 : index
    %1 = vector.load %arg3[%c0_1, %c0_2] : memref<1x256xf32, #tpu.memory_space<vmem>>, vector<1x256xf32>
    %c0_3 = arith.constant 0 : index
    %c0_4 = arith.constant 0 : index
    %2 = vector.load %arg5[%c0_3, %c0_4] : memref<1x256xf32, #tpu.memory_space<vmem>>, vector<1x256xf32>
    %c0_5 = arith.constant 0 : index
    %c0_6 = arith.constant 0 : index
    %3 = vector.load %arg7[%c0_5, %c0_6] : memref<1x256xf32, #tpu.memory_space<vmem>>, vector<1x256xf32>
    %c0_7 = arith.constant 0 : index
    %c0_8 = arith.constant 0 : index
    %4 = vector.load %arg8[%c0_7, %c0_8] : memref<1x128xf32, #tpu.memory_space<vmem>>, vector<1x128xf32>
    %c0_9 = arith.constant 0 : index
    %c0_10 = arith.constant 0 : index
    %5 = vector.load %arg9[%c0_9, %c0_10] : memref<1x128xf32, #tpu.memory_space<vmem>>, vector<1x128xf32>
    %c0_11 = arith.constant 0 : index
    %c0_12 = arith.constant 0 : index
    %6 = vector.load %arg10[%c0_11, %c0_12] : memref<1x128xf32, #tpu.memory_space<vmem>>, vector<1x128xf32>
    %c0_13 = arith.constant 0 : index
    %c0_14 = arith.constant 0 : index
    %7 = vector.load %arg11[%c0_13, %c0_14] : memref<1x128xf32, #tpu.memory_space<vmem>>, vector<1x128xf32>
    %c0_15 = arith.constant 0 : index
    %c0_16 = arith.constant 0 : index
    %8 = vector.load %arg12[%c0_15, %c0_16] : memref<1x128xf32, #tpu.memory_space<vmem>>, vector<1x128xf32>
    %c0_17 = arith.constant 0 : index
    %c0_18 = arith.constant 0 : index
    %9 = vector.load %arg2[%c0_17, %c0_18] : memref<32x256xbf16, #tpu.memory_space<vmem>>, vector<32x256xbf16>
    %cst = arith.constant dense<0.000000e+00> : vector<16x256xf32>
    %10 = tpu.matmul %0, %9, %cst {dimension_numbers = #tpu.dot_dimension_numbers<[1], [0], [0], [1], [0, 0, 1, 1], [], []>} : vector<16x32xbf16>, vector<32x256xbf16>, vector<16x256xf32> -> vector<16x256xf32>
    %11 = vector.broadcast %1 : vector<1x256xf32> to vector<16x256xf32>
    %12 = arith.addf %10, %11 : vector<16x256xf32>
    %13 = vector.extract_strided_slice %12 {offsets = [0, 0], sizes = [16, 128], strides = [1, 1]} : vector<16x256xf32> to vector<16x128xf32>
    %cst_19 = arith.constant dense<0.000000e+00> : vector<16xf32>
    %14 = vector.multi_reduction <add>, %13, %cst_19 [1] : vector<16x128xf32> to vector<16xf32>
    %15 = vector.shape_cast %14 : vector<16xf32> to vector<16x1xf32>
    %cst_20 = arith.constant 1.280000e+02 : f32
    %16 = vector.broadcast %cst_20 : f32 to vector<16x1xf32>
    %17 = arith.divf %15, %16 : vector<16x1xf32>
    %18 = vector.broadcast %17 : vector<16x1xf32> to vector<16x128xf32>
    %19 = arith.subf %13, %18 : vector<16x128xf32>
    %20 = arith.mulf %19, %19 : vector<16x128xf32>
    %cst_21 = arith.constant dense<0.000000e+00> : vector<16xf32>
    %21 = vector.multi_reduction <add>, %20, %cst_21 [1] : vector<16x128xf32> to vector<16xf32>
    %22 = vector.shape_cast %21 : vector<16xf32> to vector<16x1xf32>
    %cst_22 = arith.constant 1.280000e+02 : f32
    %23 = vector.broadcast %cst_22 : f32 to vector<16x1xf32>
    %24 = arith.divf %22, %23 : vector<16x1xf32>
    %cst_23 = arith.constant 9.99999974E-6 : f32
    %25 = vector.broadcast %cst_23 : f32 to vector<16x1xf32>
    %26 = arith.addf %24, %25 : vector<16x1xf32>
    %27 = math.rsqrt %26 : vector<16x1xf32>
    %28 = vector.broadcast %27 : vector<16x1xf32> to vector<16x128xf32>
    %29 = arith.mulf %19, %28 : vector<16x128xf32>
    %30 = vector.broadcast %4 : vector<1x128xf32> to vector<16x128xf32>
    %31 = arith.mulf %29, %30 : vector<16x128xf32>
    %32 = vector.broadcast %5 : vector<1x128xf32> to vector<16x128xf32>
    %33 = arith.addf %31, %32 : vector<16x128xf32>
    %cst_24 = arith.constant -2.000000e+00 : f32
    %cst_25 = arith.constant 2.000000e+00 : f32
    %34 = vector.broadcast %cst_24 : f32 to vector<16x128xf32>
    %35 = arith.maximumf %34, %33 : vector<16x128xf32>
    %36 = vector.broadcast %cst_25 : f32 to vector<16x128xf32>
    %37 = arith.minimumf %36, %35 : vector<16x128xf32>
    %38 = vector.extract_strided_slice %12 {offsets = [0, 128], sizes = [16, 128], strides = [1, 1]} : vector<16x256xf32> to vector<16x128xf32>
    %cst_26 = arith.constant dense<0.000000e+00> : vector<16xf32>
    %39 = vector.multi_reduction <add>, %38, %cst_26 [1] : vector<16x128xf32> to vector<16xf32>
    %40 = vector.shape_cast %39 : vector<16xf32> to vector<16x1xf32>
    %cst_27 = arith.constant 1.280000e+02 : f32
    %41 = vector.broadcast %cst_27 : f32 to vector<16x1xf32>
    %42 = arith.divf %40, %41 : vector<16x1xf32>
    %43 = vector.broadcast %42 : vector<16x1xf32> to vector<16x128xf32>
    %44 = arith.subf %38, %43 : vector<16x128xf32>
    %45 = arith.mulf %44, %44 : vector<16x128xf32>
    %cst_28 = arith.constant dense<0.000000e+00> : vector<16xf32>
    %46 = vector.multi_reduction <add>, %45, %cst_28 [1] : vector<16x128xf32> to vector<16xf32>
    %47 = vector.shape_cast %46 : vector<16xf32> to vector<16x1xf32>
    %cst_29 = arith.constant 1.280000e+02 : f32
    %48 = vector.broadcast %cst_29 : f32 to vector<16x1xf32>
    %49 = arith.divf %47, %48 : vector<16x1xf32>
    %cst_30 = arith.constant 9.99999974E-6 : f32
    %50 = vector.broadcast %cst_30 : f32 to vector<16x1xf32>
    %51 = arith.addf %49, %50 : vector<16x1xf32>
    %52 = math.rsqrt %51 : vector<16x1xf32>
    %53 = vector.broadcast %52 : vector<16x1xf32> to vector<16x128xf32>
    %54 = arith.mulf %44, %53 : vector<16x128xf32>
    %55 = vector.broadcast %6 : vector<1x128xf32> to vector<16x128xf32>
    %56 = arith.mulf %54, %55 : vector<16x128xf32>
    %57 = vector.broadcast %7 : vector<1x128xf32> to vector<16x128xf32>
    %58 = arith.addf %56, %57 : vector<16x128xf32>
    %cst_31 = arith.constant -2.000000e+00 : f32
    %cst_32 = arith.constant 2.000000e+00 : f32
    %59 = vector.broadcast %cst_31 : f32 to vector<16x128xf32>
    %60 = arith.maximumf %59, %58 : vector<16x128xf32>
    %61 = vector.broadcast %cst_32 : f32 to vector<16x128xf32>
    %62 = arith.minimumf %61, %60 : vector<16x128xf32>
    %63 = arith.truncf %37 : vector<16x128xf32> to vector<16x128xbf16>
    %c0_33 = arith.constant 0 : index
    %c0_34 = arith.constant 0 : index
    %64 = vector.load %arg4[%c0_33, %c0_34] : memref<128x256xbf16, #tpu.memory_space<vmem>>, vector<128x256xbf16>
    %cst_35 = arith.constant dense<0.000000e+00> : vector<16x256xf32>
    %65 = tpu.matmul %63, %64, %cst_35 {dimension_numbers = #tpu.dot_dimension_numbers<[1], [0], [0], [1], [0, 0, 1, 1], [], []>} : vector<16x128xbf16>, vector<128x256xbf16>, vector<16x256xf32> -> vector<16x256xf32>
    %66 = vector.broadcast %2 : vector<1x256xf32> to vector<16x256xf32>
    %67 = arith.addf %65, %66 : vector<16x256xf32>
    %68 = vector.extract_strided_slice %67 {offsets = [0, 0], sizes = [16, 128], strides = [1, 1]} : vector<16x256xf32> to vector<16x128xf32>
    %cst_36 = arith.constant dense<0xFF800000> : vector<16xf32>
    %69 = vector.multi_reduction <maximumf>, %68, %cst_36 [1] : vector<16x128xf32> to vector<16xf32>
    %70 = vector.shape_cast %69 : vector<16xf32> to vector<16x1xf32>
    %71 = vector.broadcast %70 : vector<16x1xf32> to vector<16x128xf32>
    %72 = arith.subf %68, %71 : vector<16x128xf32>
    %73 = math.exp %72 : vector<16x128xf32>
    %cst_37 = arith.constant dense<0.000000e+00> : vector<16xf32>
    %74 = vector.multi_reduction <add>, %73, %cst_37 [1] : vector<16x128xf32> to vector<16xf32>
    %75 = vector.shape_cast %74 : vector<16xf32> to vector<16x1xf32>
    %76 = tpu.reciprocal %75 {approx = true} : vector<16x1xf32> -> vector<16x1xf32>
    %77 = vector.broadcast %76 : vector<16x1xf32> to vector<16x128xf32>
    %78 = arith.mulf %73, %77 : vector<16x128xf32>
    %79 = vector.extract_strided_slice %67 {offsets = [0, 128], sizes = [16, 128], strides = [1, 1]} : vector<16x256xf32> to vector<16x128xf32>
    %80 = math.tanh %79 : vector<16x128xf32>
    %81 = arith.mulf %37, %80 : vector<16x128xf32>
    %82 = arith.truncf %62 : vector<16x128xf32> to vector<16x128xbf16>
    %c0_38 = arith.constant 0 : index
    %c0_39 = arith.constant 0 : index
    %83 = vector.load %arg6[%c0_38, %c0_39] : memref<128x256xbf16, #tpu.memory_space<vmem>>, vector<128x256xbf16>
    %cst_40 = arith.constant dense<0.000000e+00> : vector<16x256xf32>
    %84 = tpu.matmul %82, %83, %cst_40 {dimension_numbers = #tpu.dot_dimension_numbers<[1], [0], [0], [1], [0, 0, 1, 1], [], []>} : vector<16x128xbf16>, vector<128x256xbf16>, vector<16x256xf32> -> vector<16x256xf32>
    %85 = vector.broadcast %3 : vector<1x256xf32> to vector<16x256xf32>
    %86 = arith.addf %84, %85 : vector<16x256xf32>
    %87 = vector.extract_strided_slice %86 {offsets = [0, 0], sizes = [16, 128], strides = [1, 1]} : vector<16x256xf32> to vector<16x128xf32>
    %cst_41 = arith.constant dense<0xFF800000> : vector<16xf32>
    %88 = vector.multi_reduction <maximumf>, %87, %cst_41 [1] : vector<16x128xf32> to vector<16xf32>
    %89 = vector.shape_cast %88 : vector<16xf32> to vector<16x1xf32>
    %90 = vector.broadcast %89 : vector<16x1xf32> to vector<16x128xf32>
    %91 = arith.subf %87, %90 : vector<16x128xf32>
    %92 = math.exp %91 : vector<16x128xf32>
    %cst_42 = arith.constant dense<0.000000e+00> : vector<16xf32>
    %93 = vector.multi_reduction <add>, %92, %cst_42 [1] : vector<16x128xf32> to vector<16xf32>
    %94 = vector.shape_cast %93 : vector<16xf32> to vector<16x1xf32>
    %95 = tpu.reciprocal %94 {approx = true} : vector<16x1xf32> -> vector<16x1xf32>
    %96 = vector.broadcast %95 : vector<16x1xf32> to vector<16x128xf32>
    %97 = arith.mulf %92, %96 : vector<16x128xf32>
    %98 = vector.extract_strided_slice %86 {offsets = [0, 128], sizes = [16, 128], strides = [1, 1]} : vector<16x256xf32> to vector<16x128xf32>
    %99 = math.tanh %98 : vector<16x128xf32>
    %100 = arith.mulf %62, %99 : vector<16x128xf32>
    %101 = arith.mulf %97, %81 : vector<16x128xf32>
    %102 = arith.mulf %78, %100 : vector<16x128xf32>
    %103 = arith.subf %101, %102 : vector<16x128xf32>
    %cst_43 = arith.constant 0.0441941731 : f32
    %104 = vector.broadcast %cst_43 : f32 to vector<16x128xf32>
    %105 = arith.mulf %104, %103 : vector<16x128xf32>
    %106 = arith.addf %62, %105 : vector<16x128xf32>
    %107 = vector.broadcast %8 : vector<1x128xf32> to vector<16x128xf32>
    %108 = arith.addf %106, %107 : vector<16x128xf32>
    %c0_44 = arith.constant 0 : index
    %c0_45 = arith.constant 0 : index
    %109 = vector.load %arg13[%c0_44, %c0_45] : memref<16x128xf32, #tpu.memory_space<vmem>>, vector<16x128xf32>
    tpu.vector_store %arg13[%c0_44, %c0_45], %108 {strides = array<i32>} : memref<16x128xf32, #tpu.memory_space<vmem>>, vector<16x128xf32>,
    return
  }
  func.func @transform_0(%arg0: i32) -> (i32, i32) {
    %c0_i32 = arith.constant 0 : i32
    %c0_i32_0 = arith.constant 0 : i32
    return %arg0, %c0_i32 : i32, i32
  }
  func.func @transform_1(%arg0: i32) -> (i32, i32) {
    %c0_i32 = arith.constant 0 : i32
    %c0_i32_0 = arith.constant 0 : i32
    %c0_i32_1 = arith.constant 0 : i32
    return %c0_i32, %c0_i32_0 : i32, i32
  }
  func.func @transform_2(%arg0: i32) -> (i32, i32) {
    %c0_i32 = arith.constant 0 : i32
    %c0_i32_0 = arith.constant 0 : i32
    %c0_i32_1 = arith.constant 0 : i32
    return %c0_i32, %c0_i32_0 : i32, i32
  }
  func.func @transform_3(%arg0: i32) -> (i32, i32) {
    %c0_i32 = arith.constant 0 : i32
    %c0_i32_0 = arith.constant 0 : i32
    %c0_i32_1 = arith.constant 0 : i32
    return %c0_i32, %c0_i32_0 : i32, i32
  }
  func.func @transform_4(%arg0: i32) -> (i32, i32) {
    %c0_i32 = arith.constant 0 : i32
    %c0_i32_0 = arith.constant 0 : i32
    %c0_i32_1 = arith.constant 0 : i32
    return %c0_i32, %c0_i32_0 : i32, i32
  }
  func.func @transform_5(%arg0: i32) -> (i32, i32) {
    %c0_i32 = arith.constant 0 : i32
    %c0_i32_0 = arith.constant 0 : i32
    %c0_i32_1 = arith.constant 0 : i32
    return %c0_i32, %c0_i32_0 : i32, i32
  }
  func.func @transform_6(%arg0: i32) -> (i32, i32) {
    %c0_i32 = arith.constant 0 : i32
    %c0_i32_0 = arith.constant 0 : i32
    %c0_i32_1 = arith.constant 0 : i32
    return %c0_i32, %c0_i32_0 : i32, i32
  }
  func.func @transform_7(%arg0: i32) -> (i32, i32) {
    %c0_i32 = arith.constant 0 : i32
    %c0_i32_0 = arith.constant 0 : i32
    %c0_i32_1 = arith.constant 0 : i32
    return %c0_i32, %c0_i32_0 : i32, i32
  }
  func.func @transform_8(%arg0: i32) -> (i32, i32) {
    %c0_i32 = arith.constant 0 : i32
    %c0_i32_0 = arith.constant 0 : i32
    %c0_i32_1 = arith.constant 0 : i32
    return %c0_i32, %c0_i32_0 : i32, i32
  }
  func.func @transform_9(%arg0: i32) -> (i32, i32) {
    %c0_i32 = arith.constant 0 : i32
    %c0_i32_0 = arith.constant 0 : i32
    %c0_i32_1 = arith.constant 0 : i32
    return %c0_i32, %c0_i32_0 : i32, i32
  }
  func.func @transform_10(%arg0: i32) -> (i32, i32) {
    %c0_i32 = arith.constant 0 : i32
    %c0_i32_0 = arith.constant 0 : i32
    %c0_i32_1 = arith.constant 0 : i32
    return %c0_i32, %c0_i32_0 : i32, i32
  }
  func.func @transform_11(%arg0: i32) -> (i32, i32) {
    %c0_i32 = arith.constant 0 : i32
    %c0_i32_0 = arith.constant 0 : i32
    %c0_i32_1 = arith.constant 0 : i32
    return %c0_i32, %c0_i32_0 : i32, i32
  }
  func.func @transform_12(%arg0: i32) -> (i32, i32) {
    %c0_i32 = arith.constant 0 : i32
    %c0_i32_0 = arith.constant 0 : i32
    return %arg0, %c0_i32 : i32, i32
  }
}

module attributes {stable_mosaic.version = 11 : i64} {
  func.func @_quantum_kernel(%arg0: i32, %arg1: memref<16x32xbf16, #tpu.memory_space<vmem>>, %arg2: memref<32x256xbf16, #tpu.memory_space<vmem>>, %arg3: memref<1x256xf32, #tpu.memory_space<vmem>>, %arg4: memref<128x256xbf16, #tpu.memory_space<vmem>>, %arg5: memref<1x256xf32, #tpu.memory_space<vmem>>, %arg6: memref<128x256xbf16, #tpu.memory_space<vmem>>, %arg7: memref<1x256xf32, #tpu.memory_space<vmem>>, %arg8: memref<1x128xf32, #tpu.memory_space<vmem>>, %arg9: memref<1x128xf32, #tpu.memory_space<vmem>>, %arg10: memref<1x128xf32, #tpu.memory_space<vmem>>, %arg11: memref<1x128xf32, #tpu.memory_space<vmem>>, %arg12: memref<1x128xf32, #tpu.memory_space<vmem>>, %arg13: memref<16x128xf32, #tpu.memory_space<vmem>>) attributes {dimension_semantics = [#tpu.dimension_semantics<parallel>], iteration_bounds = array<i64: 1>, scalar_prefetch = 0 : i64, scratch_operands = 0 : i64, tpu.core_type = #tpu.core_type<tc>, window_params = [{transform_indices = @transform_0, window_bounds = array<i64: 16, 32>}, {pipeline_mode = #tpu.pipeline_mode<synchronous>, transform_indices = @transform_1, window_bounds = array<i64: 32, 256>}, {pipeline_mode = #tpu.pipeline_mode<synchronous>, transform_indices = @transform_2, window_bounds = array<i64: 1, 256>}, {pipeline_mode = #tpu.pipeline_mode<synchronous>, transform_indices = @transform_3, window_bounds = array<i64: 128, 256>}, {pipeline_mode = #tpu.pipeline_mode<synchronous>, transform_indices = @transform_4, window_bounds = array<i64: 1, 256>}, {pipeline_mode = #tpu.pipeline_mode<synchronous>, transform_indices = @transform_5, window_bounds = array<i64: 128, 256>}, {pipeline_mode = #tpu.pipeline_mode<synchronous>, transform_indices = @transform_6, window_bounds = array<i64: 1, 256>}, {pipeline_mode = #tpu.pipeline_mode<synchronous>, transform_indices = @transform_7, window_bounds = array<i64: 1, 128>}, {pipeline_mode = #tpu.pipeline_mode<synchronous>, transform_indices = @transform_8, window_bounds = array<i64: 1, 128>}, {pipeline_mode = #tpu.pipeline_mode<synchronous>, transform_indices = @transform_9, window_bounds = array<i64: 1, 128>}, {pipeline_mode = #tpu.pipeline_mode<synchronous>, transform_indices = @transform_10, window_bounds = array<i64: 1, 128>}, {pipeline_mode = #tpu.pipeline_mode<synchronous>, transform_indices = @transform_11, window_bounds = array<i64: 1, 128>}, {transform_indices = @transform_12, window_bounds = array<i64: 16, 128>}]} {
    %c0 = arith.constant 0 : index
    %c0_0 = arith.constant 0 : index
    %0 = vector.load %arg1[%c0, %c0_0] : memref<16x32xbf16, #tpu.memory_space<vmem>>, vector<16x32xbf16>
    %c0_1 = arith.constant 0 : index
    %c0_2 = arith.constant 0 : index
    %1 = vector.load %arg3[%c0_1, %c0_2] : memref<1x256xf32, #tpu.memory_space<vmem>>, vector<1x256xf32>
    %c0_3 = arith.constant 0 : index
    %c0_4 = arith.constant 0 : index
    %2 = vector.load %arg5[%c0_3, %c0_4] : memref<1x256xf32, #tpu.memory_space<vmem>>, vector<1x256xf32>
    %c0_5 = arith.constant 0 : index
    %c0_6 = arith.constant 0 : index
    %3 = vector.load %arg7[%c0_5, %c0_6] : memref<1x256xf32, #tpu.memory_space<vmem>>, vector<1x256xf32>
    %c0_7 = arith.constant 0 : index
    %c0_8 = arith.constant 0 : index
    %4 = vector.load %arg8[%c0_7, %c0_8] : memref<1x128xf32, #tpu.memory_space<vmem>>, vector<1x128xf32>
    %c0_9 = arith.constant 0 : index
    %c0_10 = arith.constant 0 : index
    %5 = vector.load %arg9[%c0_9, %c0_10] : memref<1x128xf32, #tpu.memory_space<vmem>>, vector<1x128xf32>
    %c0_11 = arith.constant 0 : index
    %c0_12 = arith.constant 0 : index
    %6 = vector.load %arg10[%c0_11, %c0_12] : memref<1x128xf32, #tpu.memory_space<vmem>>, vector<1x128xf32>
    %c0_13 = arith.constant 0 : index
    %c0_14 = arith.constant 0 : index
    %7 = vector.load %arg11[%c0_13, %c0_14] : memref<1x128xf32, #tpu.memory_space<vmem>>, vector<1x128xf32>
    %c0_15 = arith.constant 0 : index
    %c0_16 = arith.constant 0 : index
    %8 = vector.load %arg12[%c0_15, %c0_16] : memref<1x128xf32, #tpu.memory_space<vmem>>, vector<1x128xf32>
    %c0_17 = arith.constant 0 : index
    %c0_18 = arith.constant 0 : index
    %9 = vector.load %arg2[%c0_17, %c0_18] : memref<32x256xbf16, #tpu.memory_space<vmem>>, vector<32x256xbf16>
    %cst = arith.constant dense<0.000000e+00> : vector<16x256xf32>
    %10 = tpu.matmul %0, %9, %cst {dimension_numbers = #tpu.dot_dimension_numbers<[1], [0], [0], [1], [0, 0, 1, 1], [], []>} : vector<16x32xbf16>, vector<32x256xbf16>, vector<16x256xf32> -> vector<16x256xf32>
    %11 = vector.broadcast %1 : vector<1x256xf32> to vector<16x256xf32>
    %12 = arith.addf %10, %11 : vector<16x256xf32>
    %13 = vector.extract_strided_slice %12 {offsets = [0, 0], sizes = [16, 128], strides = [1, 1]} : vector<16x256xf32> to vector<16x128xf32>
    %cst_19 = arith.constant dense<0.000000e+00> : vector<16xf32>
    %14 = vector.multi_reduction <add>, %13, %cst_19 [1] : vector<16x128xf32> to vector<16xf32>
    %15 = vector.shape_cast %14 : vector<16xf32> to vector<16x1xf32>
    %cst_20 = arith.constant 1.280000e+02 : f32
    %16 = vector.broadcast %cst_20 : f32 to vector<16x1xf32>
    %17 = arith.divf %15, %16 : vector<16x1xf32>
    %18 = vector.broadcast %17 : vector<16x1xf32> to vector<16x128xf32>
    %19 = arith.subf %13, %18 : vector<16x128xf32>
    %20 = arith.mulf %19, %19 : vector<16x128xf32>
    %cst_21 = arith.constant dense<0.000000e+00> : vector<16xf32>
    %21 = vector.multi_reduction <add>, %20, %cst_21 [1] : vector<16x128xf32> to vector<16xf32>
    %22 = vector.shape_cast %21 : vector<16xf32> to vector<16x1xf32>
    %cst_22 = arith.constant 1.280000e+02 : f32
    %23 = vector.broadcast %cst_22 : f32 to vector<16x1xf32>
    %24 = arith.divf %22, %23 : vector<16x1xf32>
    %cst_23 = arith.constant 9.99999974E-6 : f32
    %25 = vector.broadcast %cst_23 : f32 to vector<16x1xf32>
    %26 = arith.addf %24, %25 : vector<16x1xf32>
    %27 = math.rsqrt %26 : vector<16x1xf32>
    %28 = vector.broadcast %27 : vector<16x1xf32> to vector<16x128xf32>
    %29 = arith.mulf %19, %28 : vector<16x128xf32>
    %30 = vector.broadcast %4 : vector<1x128xf32> to vector<16x128xf32>
    %31 = arith.mulf %29, %30 : vector<16x128xf32>
    %32 = vector.broadcast %5 : vector<1x128xf32> to vector<16x128xf32>
    %33 = arith.addf %31, %32 : vector<16x128xf32>
    %cst_24 = arith.constant -2.000000e+00 : f32
    %cst_25 = arith.constant 2.000000e+00 : f32
    %34 = vector.broadcast %cst_24 : f32 to vector<16x128xf32>
    %35 = arith.maximumf %34, %33 : vector<16x128xf32>
    %36 = vector.broadcast %cst_25 : f32 to vector<16x128xf32>
    %37 = arith.minimumf %36, %35 : vector<16x128xf32>
    %38 = vector.extract_strided_slice %12 {offsets = [0, 128], sizes = [16, 128], strides = [1, 1]} : vector<16x256xf32> to vector<16x128xf32>
    %cst_26 = arith.constant dense<0.000000e+00> : vector<16xf32>
    %39 = vector.multi_reduction <add>, %38, %cst_26 [1] : vector<16x128xf32> to vector<16xf32>
    %40 = vector.shape_cast %39 : vector<16xf32> to vector<16x1xf32>
    %cst_27 = arith.constant 1.280000e+02 : f32
    %41 = vector.broadcast %cst_27 : f32 to vector<16x1xf32>
    %42 = arith.divf %40, %41 : vector<16x1xf32>
    %43 = vector.broadcast %42 : vector<16x1xf32> to vector<16x128xf32>
    %44 = arith.subf %38, %43 : vector<16x128xf32>
    %45 = arith.mulf %44, %44 : vector<16x128xf32>
    %cst_28 = arith.constant dense<0.000000e+00> : vector<16xf32>
    %46 = vector.multi_reduction <add>, %45, %cst_28 [1] : vector<16x128xf32> to vector<16xf32>
    %47 = vector.shape_cast %46 : vector<16xf32> to vector<16x1xf32>
    %cst_29 = arith.constant 1.280000e+02 : f32
    %48 = vector.broadcast %cst_29 : f32 to vector<16x1xf32>
    %49 = arith.divf %47, %48 : vector<16x1xf32>
    %cst_30 = arith.constant 9.99999974E-6 : f32
    %50 = vector.broadcast %cst_30 : f32 to vector<16x1xf32>
    %51 = arith.addf %49, %50 : vector<16x1xf32>
    %52 = math.rsqrt %51 : vector<16x1xf32>
    %53 = vector.broadcast %52 : vector<16x1xf32> to vector<16x128xf32>
    %54 = arith.mulf %44, %53 : vector<16x128xf32>
    %55 = vector.broadcast %6 : vector<1x128xf32> to vector<16x128xf32>
    %56 = arith.mulf %54, %55 : vector<16x128xf32>
    %57 = vector.broadcast %7 : vector<1x128xf32> to vector<16x128xf32>
    %58 = arith.addf %56, %57 : vector<16x128xf32>
    %cst_31 = arith.constant -2.000000e+00 : f32
    %cst_32 = arith.constant 2.000000e+00 : f32
    %59 = vector.broadcast %cst_31 : f32 to vector<16x128xf32>
    %60 = arith.maximumf %59, %58 : vector<16x128xf32>
    %61 = vector.broadcast %cst_32 : f32 to vector<16x128xf32>
    %62 = arith.minimumf %61, %60 : vector<16x128xf32>
    %63 = arith.truncf %37 : vector<16x128xf32> to vector<16x128xbf16>
    %c0_33 = arith.constant 0 : index
    %c0_34 = arith.constant 0 : index
    %64 = vector.load %arg4[%c0_33, %c0_34] : memref<128x256xbf16, #tpu.memory_space<vmem>>, vector<128x256xbf16>
    %cst_35 = arith.constant dense<0.000000e+00> : vector<16x256xf32>
    %65 = tpu.matmul %63, %64, %cst_35 {dimension_numbers = #tpu.dot_dimension_numbers<[1], [0], [0], [1], [0, 0, 1, 1], [], []>} : vector<16x128xbf16>, vector<128x256xbf16>, vector<16x256xf32> -> vector<16x256xf32>
    %66 = vector.broadcast %2 : vector<1x256xf32> to vector<16x256xf32>
    %67 = arith.addf %65, %66 : vector<16x256xf32>
    %68 = vector.extract_strided_slice %67 {offsets = [0, 0], sizes = [16, 128], strides = [1, 1]} : vector<16x256xf32> to vector<16x128xf32>
    %cst_36 = arith.constant dense<0xFF800000> : vector<16xf32>
    %69 = vector.multi_reduction <maximumf>, %68, %cst_36 [1] : vector<16x128xf32> to vector<16xf32>
    %70 = vector.shape_cast %69 : vector<16xf32> to vector<16x1xf32>
    %71 = vector.broadcast %70 : vector<16x1xf32> to vector<16x128xf32>
    %72 = arith.subf %68, %71 : vector<16x128xf32>
    %73 = math.exp %72 : vector<16x128xf32>
    %cst_37 = arith.constant dense<0.000000e+00> : vector<16xf32>
    %74 = vector.multi_reduction <add>, %73, %cst_37 [1] : vector<16x128xf32> to vector<16xf32>
    %75 = vector.shape_cast %74 : vector<16xf32> to vector<16x1xf32>
    %76 = tpu.reciprocal %75 {approx = true} : vector<16x1xf32> -> vector<16x1xf32>
    %77 = vector.broadcast %76 : vector<16x1xf32> to vector<16x128xf32>
    %78 = arith.mulf %73, %77 : vector<16x128xf32>
    %79 = vector.extract_strided_slice %67 {offsets = [0, 128], sizes = [16, 128], strides = [1, 1]} : vector<16x256xf32> to vector<16x128xf32>
    %80 = math.tanh %79 : vector<16x128xf32>
    %81 = arith.mulf %37, %80 : vector<16x128xf32>
    %82 = arith.truncf %62 : vector<16x128xf32> to vector<16x128xbf16>
    %c0_38 = arith.constant 0 : index
    %c0_39 = arith.constant 0 : index
    %83 = vector.load %arg6[%c0_38, %c0_39] : memref<128x256xbf16, #tpu.memory_space<vmem>>, vector<128x256xbf16>
    %cst_40 = arith.constant dense<0.000000e+00> : vector<16x256xf32>
    %84 = tpu.matmul %82, %83, %cst_40 {dimension_numbers = #tpu.dot_dimension_numbers<[1], [0], [0], [1], [0, 0, 1, 1], [], []>} : vector<16x128xbf16>, vector<128x256xbf16>, vector<16x256xf32> -> vector<16x256xf32>
    %85 = vector.broadcast %3 : vector<1x256xf32> to vector<16x256xf32>
    %86 = arith.addf %84, %85 : vector<16x256xf32>
    %87 = vector.extract_strided_slice %86 {offsets = [0, 0], sizes = [16, 128], strides = [1, 1]} : vector<16x256xf32> to vector<16x128xf32>
    %cst_41 = arith.constant dense<0xFF800000> : vector<16xf32>
    %88 = vector.multi_reduction <maximumf>, %87, %cst_41 [1] : vector<16x128xf32> to vector<16xf32>
    %89 = vector.shape_cast %88 : vector<16xf32> to vector<16x1xf32>
    %90 = vector.broadcast %89 : vector<16x1xf32> to vector<16x128xf32>
    %91 = arith.subf %87, %90 : vector<16x128xf32>
    %92 = math.exp %91 : vector<16x128xf32>
    %cst_42 = arith.constant dense<0.000000e+00> : vector<16xf32>
    %93 = vector.multi_reduction <add>, %92, %cst_42 [1] : vector<16x128xf32> to vector<16xf32>
    %94 = vector.shape_cast %93 : vector<16xf32> to vector<16x1xf32>
    %95 = tpu.reciprocal %94 {approx = true} : vector<16x1xf32> -> vector<16x1xf32>
    %96 = vector.broadcast %95 : vector<16x1xf32> to vector<16x128xf32>
    %97 = arith.mulf %92, %96 : vector<16x128xf32>
    %98 = vector.extract_strided_slice %86 {offsets = [0, 128], sizes = [16, 128], strides = [1, 1]} : vector<16x256xf32> to vector<16x128xf32>
    %99 = math.tanh %98 : vector<16x128xf32>
    %100 = arith.mulf %62, %99 : vector<16x128xf32>
    %101 = arith.mulf %97, %81 : vector<16x128xf32>
    %102 = arith.mulf %78, %100 : vector<16x128xf32>
    %103 = arith.subf %101, %102 : vector<16x128xf32>
    %cst_43 = arith.constant 0.0441941731 : f32
    %104 = vector.broadcast %cst_43 : f32 to vector<16x128xf32>
    %105 = arith.mulf %104, %103 : vector<16x128xf32>
    %106 = arith.addf %62, %105 : vector<16x128xf32>
    %107 = vector.broadcast %8 : vector<1x128xf32> to vector<16x128xf32>
    %108 = arith.addf %106, %107 : vector<16x128xf32>
    %c0_44 = arith.constant 0 : index
    %c0_45 = arith.constant 0 : index
    %109 = vector.load %arg13[%c0_44, %c0_45] : memref<16x128xf32, #tpu.memory_space<vmem>>, vector<16x128xf32>
    tpu.vector_store %arg13[%c0_44, %c0_45], %108 {strides = array<i32>} : memref<16x128xf32, #tpu.memory_space<vmem>>, vector<16x128xf32>,
    return
  }
  func.func @transform_0(%arg0: i32) -> (i32, i32) {
    %c0_i32 = arith.constant 0 : i32
    %c0_i32_0 = arith.constant 0 : i32
    return %arg0, %c0_i32 : i32, i32
  }
  func.func @transform_1(%arg0: i32) -> (i32, i32) {
    %c0_i32 = arith.constant 0 : i32
    %c0_i32_0 = arith.constant 0 : i32
    %c0_i32_1 = arith.constant 0 : i32
    return %c0_i32, %c0_i32_0 : i32, i32
  }
  func.func @transform_2(%arg0: i32) -> (i32, i32) {
    %c0_i32 = arith.constant 0 : i32
    %c0_i32_0 = arith.constant 0 : i32
    %c0_i32_1 = arith.constant 0 : i32
    return %c0_i32, %c0_i32_0 : i32, i32
  }
  func.func @transform_3(%arg0: i32) -> (i32, i32) {
    %c0_i32 = arith.constant 0 : i32
    %c0_i32_0 = arith.constant 0 : i32
    %c0_i32_1 = arith.constant 0 : i32
    return %c0_i32, %c0_i32_0 : i32, i32
  }
  func.func @transform_4(%arg0: i32) -> (i32, i32) {
    %c0_i32 = arith.constant 0 : i32
    %c0_i32_0 = arith.constant 0 : i32
    %c0_i32_1 = arith.constant 0 : i32
    return %c0_i32, %c0_i32_0 : i32, i32
  }
  func.func @transform_5(%arg0: i32) -> (i32, i32) {
    %c0_i32 = arith.constant 0 : i32
    %c0_i32_0 = arith.constant 0 : i32
    %c0_i32_1 = arith.constant 0 : i32
    return %c0_i32, %c0_i32_0 : i32, i32
  }
  func.func @transform_6(%arg0: i32) -> (i32, i32) {
    %c0_i32 = arith.constant 0 : i32
    %c0_i32_0 = arith.constant 0 : i32
    %c0_i32_1 = arith.constant 0 : i32
    return %c0_i32, %c0_i32_0 : i32, i32
  }
  func.func @transform_7(%arg0: i32) -> (i32, i32) {
    %c0_i32 = arith.constant 0 : i32
    %c0_i32_0 = arith.constant 0 : i32
    %c0_i32_1 = arith.constant 0 : i32
    return %c0_i32, %c0_i32_0 : i32, i32
  }
  func.func @transform_8(%arg0: i32) -> (i32, i32) {
    %c0_i32 = arith.constant 0 : i32
    %c0_i32_0 = arith.constant 0 : i32
    %c0_i32_1 = arith.constant 0 : i32
    return %c0_i32, %c0_i32_0 : i32, i32
  }
  func.func @transform_9(%arg0: i32) -> (i32, i32) {
    %c0_i32 = arith.constant 0 : i32
    %c0_i32_0 = arith.constant 0 : i32
    %c0_i32_1 = arith.constant 0 : i32
    return %c0_i32, %c0_i32_0 : i32, i32
  }
  func.func @transform_10(%arg0: i32) -> (i32, i32) {
    %c0_i32 = arith.constant 0 : i32
    %c0_i32_0 = arith.constant 0 : i32
    %c0_i32_1 = arith.constant 0 : i32
    return %c0_i32, %c0_i32_0 : i32, i32
  }
  func.func @transform_11(%arg0: i32) -> (i32, i32) {
    %c0_i32 = arith.constant 0 : i32
    %c0_i32_0 = arith.constant 0 : i32
    %c0_i32_1 = arith.constant 0 : i32
    return %c0_i32, %c0_i32_0 : i32, i32
  }
  func.func @transform_12(%arg0: i32) -> (i32, i32) {
    %c0_i32 = arith.constant 0 : i32
    %c0_i32_0 = arith.constant 0 : i32
    return %arg0, %c0_i32 : i32, i32
  }
}

</mosaic_0001>

<llo_original>
// kernel: tpu_custom_call.1
$region0: #{tpu_custom_call.1}
  #allocation0 [shape = 'u32[]', space=smem, size = 0x4, offset = 0x4, fixed_abs, tag = 'smem constant byte address 0x4 - core index']
  #allocation1 [shape = 'u32[72,128]{1,0:T(1,128)}', space=vmem, size = 0x9000, scoped, tag = 'internal scratch']
  %s0 = inlined_call_operand.hbm [shape: bf16[16,32], index: 0, kind: input, shape index: {}]
  %s1 = inlined_call_operand.hbm [shape: bf16[32,256], index: 1, kind: input, shape index: {}]
  %s2 = inlined_call_operand.hbm [shape: f32[1,256], index: 2, kind: input, shape index: {}]
  %s3 = inlined_call_operand.hbm [shape: bf16[128,256], index: 3, kind: input, shape index: {}]
  %s4 = inlined_call_operand.vmem [shape: f32[1,256], index: 4, kind: input, shape index: {}]
  %s5 = inlined_call_operand.hbm [shape: bf16[128,256], index: 5, kind: input, shape index: {}]
  %s6 = inlined_call_operand.vmem [shape: f32[1,256], index: 6, kind: input, shape index: {}]
  %s7 = inlined_call_operand.vmem [shape: f32[1,128], index: 7, kind: input, shape index: {}]
  %s8 = inlined_call_operand.vmem [shape: f32[1,128], index: 8, kind: input, shape index: {}]
  %s9 = inlined_call_operand.vmem [shape: f32[1,128], index: 9, kind: input, shape index: {}]
  %s10 = inlined_call_operand.vmem [shape: f32[1,128], index: 10, kind: input, shape index: {}]
  %s11 = inlined_call_operand.vmem [shape: f32[1,128], index: 11, kind: input, shape index: {}]
  %s12 = inlined_call_operand.hbm [shape: f32[16,128], index: 12, kind: output, shape index: {}]
  %s13 = sld [smem:[#allocation0]]
  $region78: #{tpu_custom_call.1} parent=0
    _
  %s15 = ssub.s32 1, %s13
  %s16 = scalar_select 0, %s15, %s13
  $region1: #{tpu_custom_call.1} parent=0
    #allocation2 [shape = 'u8[4096]{0}', space=vmem, size = 0x1000, scoped, tag = 'input window, operand 0, single buffered']
    #allocation3 [shape = 's32[1]{0}', space=sflag, size = 0x4, scoped, tag = 'scoped memory for tpu_custom_call.1']
    #allocation4 [shape = 's32[1]{0}', space=sflag, size = 0x4, scoped, tag = 'scoped memory for tpu_custom_call.1']
    #allocation5 [shape = 'u8[16384]{0}', space=vmem, size = 0x4000, scoped, tag = 'input window, operand 1, single buffered']
    #allocation6 [shape = 's32[1]{0}', space=sflag, size = 0x4, scoped, tag = 'scoped memory for tpu_custom_call.1']
    #allocation7 [shape = 'u8[1024]{0}', space=vmem, size = 0x400, scoped, tag = 'input window, operand 2, single buffered']
    #allocation8 [shape = 'u8[65536]{0}', space=vmem, size = 0x10000, scoped, tag = 'input window, operand 3, single buffered']
    #allocation9 [shape = 's32[1]{0}', space=sflag, size = 0x4, scoped, tag = 'scoped memory for tpu_custom_call.1']
    #allocation10 [shape = 'u8[65536]{0}', space=vmem, size = 0x10000, scoped, tag = 'input window, operand 5, single buffered']
    #allocation11 [shape = 'u8[8192]{0}', space=vmem, size = 0x2000, scoped, tag = 'output window, operand 0, single buffered']
    %17 = vsyncpa [#allocation3], 0
    %18 = vsyncpa [#allocation6], 0
    %19 = vsyncpa [#allocation9], 0
    %20 = vsyncpa [#allocation4], 0
    // Predicated region
    $region2: #{tpu_custom_call.1} parent=1 // pred_check
      _
    $region3: #{tpu_custom_call.1} parent=1 // pred_check_branch
      %22 = sbr.rel (0) target = $region5
    $region4: #{tpu_custom_call.1} parent=1 // pred_region
      %24 = vsyncadd [#allocation3], 0
      %s25 = sshll.u32 %s0, 4
      %s26 = int_to_ptr.hbm [resolvable:$true] %s25
      %s27 = sshll.u32 [#allocation2], 4
      %s28 = int_to_ptr.vmem [resolvable:$true] %s27
      %33 = dma.hbm_to_vmem [thread:$0]  %s26, 128, %s28, [#allocation3], 64, 64, 4
    $region5: #{tpu_custom_call.1} parent=1 // pred_fallthru
      _
    // Predicated region
    $region6: #{tpu_custom_call.1} parent=1 // pred_check
      _
    $region7: #{tpu_custom_call.1} parent=1 // pred_check_branch
      %35 = sbr.rel (0) target = $region9
    $region8: #{tpu_custom_call.1} parent=1 // pred_region
      %37 = vsyncadd [#allocation6], 0
      %s38 = sshll.u32 %s1, 4
      %s39 = int_to_ptr.hbm [resolvable:$true] %s38
      %s40 = sshll.u32 [#allocation5], 4
      %s41 = int_to_ptr.vmem [resolvable:$true] %s40
      %46 = dma.hbm_to_vmem [thread:$0]  %s39, 512, %s41, [#allocation6], 128, 128, 8
    $region9: #{tpu_custom_call.1} parent=1 // pred_fallthru
      _
    // Predicated region
    $region10: #{tpu_custom_call.1} parent=1 // pred_check
      _
    $region11: #{tpu_custom_call.1} parent=1 // pred_check_branch
      %48 = sbr.rel (0) target = $region13
    $region12: #{tpu_custom_call.1} parent=1 // pred_region
      %50 = vsyncadd [#allocation6], 0
      %s52 = sshll.u32 %s2, 4
      %s53 = int_to_ptr.hbm [resolvable:$true] %s52
      %s54 = sshll.u32 [#allocation7], 4
      %s55 = int_to_ptr.vmem [resolvable:$true] %s54
      %57 = dma.hbm_to_vmem [thread:$0]  %s53, 32, %s55, [#allocation6]
    $region13: #{tpu_custom_call.1} parent=1 // pred_fallthru
      _
    // Predicated region
    $region14: #{tpu_custom_call.1} parent=1 // pred_check
      _
    $region15: #{tpu_custom_call.1} parent=1 // pred_check_branch
      %59 = sbr.rel (0) target = $region17
    $region16: #{tpu_custom_call.1} parent=1 // pred_region
      %61 = vsyncadd [#allocation9], 0
      %s62 = sshll.u32 %s3, 4
      %s63 = int_to_ptr.hbm [resolvable:$true] %s62
      %s64 = sshll.u32 [#allocation8], 4
      %s65 = int_to_ptr.vmem [resolvable:$true] %s64
      %70 = dma.hbm_to_vmem [thread:$0]  %s63, 2048, %s65, [#allocation9], 128, 128, 8
    $region17: #{tpu_custom_call.1} parent=1 // pred_fallthru
      _
    // Predicated region
    $region18: #{tpu_custom_call.1} parent=1 // pred_check
      _
    $region19: #{tpu_custom_call.1} parent=1 // pred_check_branch
      %72 = sbr.rel (0) target = $region21
    $region20: #{tpu_custom_call.1} parent=1 // pred_region
      _
    $region21: #{tpu_custom_call.1} parent=1 // pred_fallthru
      _
    // Predicated region
    $region22: #{tpu_custom_call.1} parent=1 // pred_check
      _
    $region23: #{tpu_custom_call.1} parent=1 // pred_check_branch
      %74 = sbr.rel (0) target = $region25
    $region24: #{tpu_custom_call.1} parent=1 // pred_region
      %76 = vsyncadd [#allocation9], 0
      %s77 = sshll.u32 %s5, 4
      %s78 = int_to_ptr.hbm [resolvable:$true] %s77
      %s79 = sshll.u32 [#allocation10], 4
      %s80 = int_to_ptr.vmem [resolvable:$true] %s79
      %85 = dma.hbm_to_vmem [thread:$0]  %s78, 2048, %s80, [#allocation9], 128, 128, 8
    $region25: #{tpu_custom_call.1} parent=1 // pred_fallthru
      _
    // Predicated region
    $region26: #{tpu_custom_call.1} parent=1 // pred_check
      _
    $region27: #{tpu_custom_call.1} parent=1 // pred_check_branch
      %87 = sbr.rel (0) target = $region29
    $region28: #{tpu_custom_call.1} parent=1 // pred_region
      _
    $region29: #{tpu_custom_call.1} parent=1 // pred_fallthru
      _
    // Predicated region
    $region30: #{tpu_custom_call.1} parent=1 // pred_check
      _
    $region31: #{tpu_custom_call.1} parent=1 // pred_check_branch
      %89 = sbr.rel (0) target = $region33
    $region32: #{tpu_custom_call.1} parent=1 // pred_region
      _
    $region33: #{tpu_custom_call.1} parent=1 // pred_fallthru
      _
    // Predicated region
    $region34: #{tpu_custom_call.1} parent=1 // pred_check
      _
    $region35: #{tpu_custom_call.1} parent=1 // pred_check_branch
      %91 = sbr.rel (0) target = $region37
    $region36: #{tpu_custom_call.1} parent=1 // pred_region
      _
    $region37: #{tpu_custom_call.1} parent=1 // pred_fallthru
      _
    // Predicated region
    $region38: #{tpu_custom_call.1} parent=1 // pred_check
      _
    $region39: #{tpu_custom_call.1} parent=1 // pred_check_branch
      %93 = sbr.rel (0) target = $region41
    $region40: #{tpu_custom_call.1} parent=1 // pred_region
      _
    $region41: #{tpu_custom_call.1} parent=1 // pred_fallthru
      _
    // Predicated region
    $region42: #{tpu_custom_call.1} parent=1 // pred_check
      _
    $region43: #{tpu_custom_call.1} parent=1 // pred_check_branch
      %95 = sbr.rel (0) target = $region45
    $region44: #{tpu_custom_call.1} parent=1 // pred_region
      _
    $region45: #{tpu_custom_call.1} parent=1 // pred_fallthru
      _
    // Predicated region
    $region46: #{tpu_custom_call.1} parent=1 // pred_check
      _
    $region47: #{tpu_custom_call.1} parent=1 // pred_check_branch
      %97 = sbr.rel (0) target = $region49
    $region48: #{tpu_custom_call.1} parent=1 // pred_region
      _
    $region49: #{tpu_custom_call.1} parent=1 // pred_fallthru
      _
    // Predicated region
    $region50: #{tpu_custom_call.1} parent=1 // pred_check
      _
    $region51: #{tpu_custom_call.1} parent=1 // pred_check_branch
      %99 = sbr.rel (0) target = $region53
    $region52: #{tpu_custom_call.1} parent=1 // pred_region
      %101 = dma.done [#allocation3], 128
    $region53: #{tpu_custom_call.1} parent=1 // pred_fallthru
      _
    // Predicated region
    $region54: #{tpu_custom_call.1} parent=1 // pred_check
      _
    $region55: #{tpu_custom_call.1} parent=1 // pred_check_branch
      %103 = sbr.rel (0) target = $region57
    $region56: #{tpu_custom_call.1} parent=1 // pred_region
      %105 = dma.done [#allocation6], 512
    $region57: #{tpu_custom_call.1} parent=1 // pred_fallthru
      _
    // Predicated region
    $region58: #{tpu_custom_call.1} parent=1 // pred_check
      _
    $region59: #{tpu_custom_call.1} parent=1 // pred_check_branch
      %107 = sbr.rel (0) target = $region61
    $region60: #{tpu_custom_call.1} parent=1 // pred_region
      %109 = dma.done [#allocation6], 32
    $region61: #{tpu_custom_call.1} parent=1 // pred_fallthru
      _
    // Predicated region
    $region62: #{tpu_custom_call.1} parent=1 // pred_check
      _
    $region63: #{tpu_custom_call.1} parent=1 // pred_check_branch
      %111 = sbr.rel (0) target = $region65
    $region64: #{tpu_custom_call.1} parent=1 // pred_region
      %113 = dma.done [#allocation9], 2048
    $region65: #{tpu_custom_call.1} parent=1 // pred_fallthru
      _
    // Predicated region
    $region66: #{tpu_custom_call.1} parent=1 // pred_check
      _
    $region67: #{tpu_custom_call.1} parent=1 // pred_check_branch
      %115 = sbr.rel (0) target = $region69
    $region68: #{tpu_custom_call.1} parent=1 // pred_region
      %117 = dma.done [#allocation9], 2048
    $region69: #{tpu_custom_call.1} parent=1 // pred_fallthru
      _
    %v119 = vld [vmem:[#allocation2] sm:$0xf]
    %v120 = vld [vmem:[#allocation2 + $0x4] sm:$0xf]
    %v121 = vld [vmem:[#allocation7] sm:$0x3]
    %v122 = vld [vmem:[%s4] sm:$0x3]
    %v123 = vld [vmem:[%s6] sm:$0x3]
    %v124 = vld [vmem:[%s7] sm:$0x1]
    %v125 = vld [vmem:[%s8] sm:$0x1]
    %v126 = vld [vmem:[%s9] sm:$0x1]
    %v127 = vld [vmem:[%s10] sm:$0x1]
    %v128 = vld [vmem:[%s11] sm:$0x1]
    %v129 = vld [vmem:[#allocation5] sm:$0xff]
    %v130 = vld [vmem:[#allocation5 + $0x8] sm:$0xff]
    %v131 = vld [vmem:[#allocation5 + $0x10] sm:$0xff]
    %v132 = vld [vmem:[#allocation5 + $0x18] sm:$0xff]
    %v134 = vperm.slane %v121, 0
    %v135 = vperm.slane %v121, 1
    %v140 = vunpack.c.l.b16 %v119
    %v141 = vunpack.c.l.b16 %v120
    %v142 = vpack.c.b16 %v141, %v140
    %v147 = vunpack.c.l.b16 %v129
    %v148 = vunpack.c.h.b16 %v129
    %v149 = vunpack.c.l.b16 %v130
    %v150 = vunpack.c.h.b16 %v130
    %v151 = vunpack.c.l.b16 %v131
    %v152 = vunpack.c.h.b16 %v131
    %v153 = vunpack.c.l.b16 %v132
    %v154 = vunpack.c.h.b16 %v132
    %v155 = vpack.c.b16 %v149, %v147
    %v156 = vpack.c.b16 %v150, %v148
    %v157 = vpack.c.b16 %v153, %v151
    %v158 = vpack.c.b16 %v154, %v152
    %vm163 = vcmask 261120
    %v165 = vsel %vm163, %v142, 0
    %167 = vmatpush.bf16.msra.mxu0 0
    %168 = vmatpush.bf16.msra.mxu0 0
    %169 = vmatpush.bf16.msra.mxu0 0
    %170 = vmatpush.bf16.msra.mxu0 0
    %171 = vmatpush.bf16.msra.mxu0 0
    %172 = vmatpush.bf16.msra.mxu0 0
    %173 = vmatpush.bf16.msra.mxu0 %v157
    %174 = vmatpush.bf16.msra.mxu0 %v155
    %175 = vmatmul.bf16.gmra.mxu0 %v165
    %v176 = vpop.f32.mrf.mxu0
    %v177 = vadd.f32 %v134, %v176
    %v178 = vpop.f32.mrf.mxu0
    %v179 = vadd.f32 %v134, %v178
    %180 = vdwg.mxu0
    %181 = vmatpush.bf16.msra.mxu0 0
    %182 = vmatpush.bf16.msra.mxu0 0
    %183 = vmatpush.bf16.msra.mxu0 0
    %184 = vmatpush.bf16.msra.mxu0 0
    %185 = vmatpush.bf16.msra.mxu0 0
    %186 = vmatpush.bf16.msra.mxu0 0
    %187 = vmatpush.bf16.msra.mxu0 %v158
    %188 = vmatpush.bf16.msra.mxu0 %v156
    %189 = vmatmul.bf16.gmra.mxu0 %v165
    %v190 = vpop.f32.mrf.mxu0
    %v191 = vadd.f32 %v135, %v190
    %v192 = vpop.f32.mrf.mxu0
    %v193 = vadd.f32 %v135, %v192
    %194 = vdwg.mxu0
    %195 = vadd.xlane.f32.xlu0 %v177
    %v196 = vpop.xlane.xlu0 %195
    %197 = vadd.xlane.f32.xlu0 %v179
    %v198 = vpop.xlane.xlu0 %197
    %v199 = vrcp.pop 128.0
    %v200 = vmul.f32 128.0, %v199
    %v201 = vsub.f32 1.0, %v200
    %v202 = vmul.f32 %v199, %v201
    %v203 = vadd.f32 %v199, %v202
    %vm204 = vweird.f32 %v199
    %v205 = vsel %vm204, %v199, %v203
    %v206 = vmul.f32 %v196, %v205
    %v207 = vmul.f32 %v198, %v205
    %v208 = vsub.f32 %v177, %v206
    %v209 = vsub.f32 %v179, %v207
    %v210 = vmul.f32 %v208, %v208
    %v211 = vmul.f32 %v209, %v209
    %212 = vadd.xlane.f32.xlu0 %v210
    %v213 = vpop.xlane.xlu0 %212
    %214 = vadd.xlane.f32.xlu0 %v211
    %v215 = vpop.xlane.xlu0 %214
    %v216 = vmul.f32 %v213, %v205
    %v217 = vmul.f32 %v215, %v205
    %v218 = vadd.f32 %v216, 1e-05
    %v219 = vadd.f32 %v217, 1e-05
    %v220 = vrsqrt.pop %v218
    %v221 = vmul.f32 %v220, %v218
    %v222 = vmul.f32 %v221, %v220
    %v223 = vmul.f32 0.5, %v222
    %v224 = vsub.f32 1.5, %v223
    %v225 = vmul.f32 %v220, %v224
    %vm226 = vweird.f32 %v218
    %vm227 = vweird.f32 %v220
    %vm228 = vmor %vm226, %vm227
    %v229 = vsel %vm228, %v220, %v225
    %v230 = vrsqrt.pop %v219
    %v231 = vmul.f32 %v230, %v219
    %v232 = vmul.f32 %v231, %v230
    %v233 = vmul.f32 0.5, %v232
    %v234 = vsub.f32 1.5, %v233
    %v235 = vmul.f32 %v230, %v234
    %vm236 = vweird.f32 %v219
    %vm237 = vweird.f32 %v230
    %vm238 = vmor %vm236, %vm237
    %v239 = vsel %vm238, %v230, %v235
    %v240 = vmul.f32 %v208, %v229
    %v241 = vmul.f32 %v209, %v239
    %v243 = vperm.slane %v124, 0
    %v245 = vmul.f32 %v240, %v243
    %v246 = vmul.f32 %v241, %v243
    %v248 = vperm.slane %v125, 0
    %v250 = vadd.f32 %v245, %v248
    %v251 = vadd.f32 %v246, %v248
    %v252 = vmax.f32 %v250, -2.0
    %v253 = vmax.f32 %v251, -2.0
    %v254 = vmin.f32 %v252, 2.0
    %v255 = vmin.f32 %v253, 2.0
    %256 = vadd.xlane.f32.xlu0 %v191
    %v257 = vpop.xlane.xlu0 %256
    %258 = vadd.xlane.f32.xlu0 %v193
    %v259 = vpop.xlane.xlu0 %258
    %v260 = vmul.f32 %v257, %v205
    %v261 = vmul.f32 %v259, %v205
    %v262 = vsub.f32 %v191, %v260
    %v263 = vsub.f32 %v193, %v261
    %v264 = vmul.f32 %v262, %v262
    %v265 = vmul.f32 %v263, %v263
    %266 = vadd.xlane.f32.xlu0 %v264
    %v267 = vpop.xlane.xlu0 %266
    %268 = vadd.xlane.f32.xlu0 %v265
    %v269 = vpop.xlane.xlu0 %268
    %v270 = vmul.f32 %v267, %v205
    %v271 = vmul.f32 %v269, %v205
    %v272 = vadd.f32 %v270, 1e-05
    %v273 = vadd.f32 %v271, 1e-05
    %v274 = vrsqrt.pop %v272
    %v275 = vmul.f32 %v274, %v272
    %v276 = vmul.f32 %v275, %v274
    %v277 = vmul.f32 0.5, %v276
    %v278 = vsub.f32 1.5, %v277
    %v279 = vmul.f32 %v274, %v278
    %vm280 = vweird.f32 %v272
    %vm281 = vweird.f32 %v274
    %vm282 = vmor %vm280, %vm281
    %v283 = vsel %vm282, %v274, %v279
    %v284 = vrsqrt.pop %v273
    %v285 = vmul.f32 %v284, %v273
    %v286 = vmul.f32 %v285, %v284
    %v287 = vmul.f32 0.5, %v286
    %v288 = vsub.f32 1.5, %v287
    %v289 = vmul.f32 %v284, %v288
    %vm290 = vweird.f32 %v273
    %vm291 = vweird.f32 %v284
    %vm292 = vmor %vm290, %vm291
    %v293 = vsel %vm292, %v284, %v289
    %v294 = vmul.f32 %v262, %v283
    %v295 = vmul.f32 %v263, %v293
    %v297 = vperm.slane %v126, 0
    %v299 = vmul.f32 %v294, %v297
    %v300 = vmul.f32 %v295, %v297
    %v302 = vperm.slane %v127, 0
    %v304 = vadd.f32 %v299, %v302
    %v305 = vadd.f32 %v300, %v302
    %v306 = vmax.f32 %v304, -2.0
    %v307 = vmax.f32 %v305, -2.0
    %v308 = vmin.f32 %v306, 2.0
    %v309 = vmin.f32 %v307, 2.0
    %v310 = vpack.c.bf16 %v255, %v254
    %v311 = vld [vmem:[#allocation8] sm:$0xff]
    %v312 = vld [vmem:[#allocation8 + $0x8] sm:$0xff]
    %v313 = vld [vmem:[#allocation8 + $0x10] sm:$0xff]
    %v314 = vld [vmem:[#allocation8 + $0x18] sm:$0xff]
    %v315 = vld [vmem:[#allocation8 + $0x20] sm:$0xff]
    %v316 = vld [vmem:[#allocation8 + $0x28] sm:$0xff]
    %v317 = vld [vmem:[#allocation8 + $0x30] sm:$0xff]
    %v318 = vld [vmem:[#allocation8 + $0x38] sm:$0xff]
    %v319 = vld [vmem:[#allocation8 + $0x40] sm:$0xff]
    %v320 = vld [vmem:[#allocation8 + $0x48] sm:$0xff]
    %v321 = vld [vmem:[#allocation8 + $0x50] sm:$0xff]
    %v322 = vld [vmem:[#allocation8 + $0x58] sm:$0xff]
    %v323 = vld [vmem:[#allocation8 + $0x60] sm:$0xff]
    %v324 = vld [vmem:[#allocation8 + $0x68] sm:$0xff]
    %v325 = vld [vmem:[#allocation8 + $0x70] sm:$0xff]
    %v326 = vld [vmem:[#allocation8 + $0x78] sm:$0xff]
    %v328 = vperm.slane %v122, 0
    %v329 = vperm.slane %v122, 1
    %v348 = vunpack.c.l.b16 %v311
    %v349 = vunpack.c.h.b16 %v311
    %v350 = vunpack.c.l.b16 %v312
    %v351 = vunpack.c.h.b16 %v312
    %v352 = vunpack.c.l.b16 %v313
    %v353 = vunpack.c.h.b16 %v313
    %v354 = vunpack.c.l.b16 %v314
    %v355 = vunpack.c.h.b16 %v314
    %v356 = vunpack.c.l.b16 %v315
    %v357 = vunpack.c.h.b16 %v315
    %v358 = vunpack.c.l.b16 %v316
    %v359 = vunpack.c.h.b16 %v316
    %v360 = vunpack.c.l.b16 %v317
    %v361 = vunpack.c.h.b16 %v317
    %v362 = vunpack.c.l.b16 %v318
    %v363 = vunpack.c.h.b16 %v318
    %v364 = vunpack.c.l.b16 %v319
    %v365 = vunpack.c.h.b16 %v319
    %v366 = vunpack.c.l.b16 %v320
    %v367 = vunpack.c.h.b16 %v320
    %v368 = vunpack.c.l.b16 %v321
    %v369 = vunpack.c.h.b16 %v321
    %v370 = vunpack.c.l.b16 %v322
    %v371 = vunpack.c.h.b16 %v322
    %v372 = vunpack.c.l.b16 %v323
    %v373 = vunpack.c.h.b16 %v323
    %v374 = vunpack.c.l.b16 %v324
    %v375 = vunpack.c.h.b16 %v324
    %v376 = vunpack.c.l.b16 %v325
    %v377 = vunpack.c.h.b16 %v325
    %v378 = vunpack.c.l.b16 %v326
    %v379 = vunpack.c.h.b16 %v326
    %v380 = vpack.c.b16 %v350, %v348
    %v381 = vpack.c.b16 %v351, %v349
    %v382 = vpack.c.b16 %v354, %v352
    %v383 = vpack.c.b16 %v355, %v353
    %v384 = vpack.c.b16 %v358, %v356
    %v385 = vpack.c.b16 %v359, %v357
    %v386 = vpack.c.b16 %v362, %v360
    %v387 = vpack.c.b16 %v363, %v361
    %v388 = vpack.c.b16 %v366, %v364
    %v389 = vpack.c.b16 %v367, %v365
    %v390 = vpack.c.b16 %v370, %v368
    %v391 = vpack.c.b16 %v371, %v369
    %v392 = vpack.c.b16 %v374, %v372
    %v393 = vpack.c.b16 %v375, %v373
    %v394 = vpack.c.b16 %v378, %v376
    %v395 = vpack.c.b16 %v379, %v377
    %412 = vmatpush.bf16.msra.mxu0 %v394
    %413 = vmatpush.bf16.msra.mxu0 %v392
    %414 = vmatpush.bf16.msra.mxu0 %v390
    %415 = vmatpush.bf16.msra.mxu0 %v388
    %416 = vmatpush.bf16.msra.mxu0 %v386
    %417 = vmatpush.bf16.msra.mxu0 %v384
    %418 = vmatpush.bf16.msra.mxu0 %v382
    %419 = vmatpush.bf16.msra.mxu0 %v380
    %420 = vmatmul.bf16.gmra.mxu0 %v310
    %v421 = vpop.f32.mrf.mxu0
    %v422 = vadd.f32 %v328, %v421
    %v423 = vpop.f32.mrf.mxu0
    %v424 = vadd.f32 %v328, %v423
    %425 = vdwg.mxu0
    %426 = vmatpush.bf16.msra.mxu0 %v395
    %427 = vmatpush.bf16.msra.mxu0 %v393
    %428 = vmatpush.bf16.msra.mxu0 %v391
    %429 = vmatpush.bf16.msra.mxu0 %v389
    %430 = vmatpush.bf16.msra.mxu0 %v387
    %431 = vmatpush.bf16.msra.mxu0 %v385
    %432 = vmatpush.bf16.msra.mxu0 %v383
    %433 = vmatpush.bf16.msra.mxu0 %v381
    %434 = vmatmul.bf16.gmra.mxu0 %v310
    %v435 = vpop.f32.mrf.mxu0
    %v436 = vadd.f32 %v329, %v435
    %v437 = vpop.f32.mrf.mxu0
    %v438 = vadd.f32 %v329, %v437
    %439 = vdwg.mxu0
    %440 = vmax.xlane.f32.xlu0 %v422
    %v441 = vpop.xlane.xlu0 %440
    %442 = vmax.xlane.f32.xlu0 %v424
    %v443 = vpop.xlane.xlu0 %442
    %v444 = vsub.f32 %v422, %v441
    %v445 = vsub.f32 %v424, %v443
    %v446 = vmul.f32 %v444, 1.442695
    %v447 = vpow.pop %v446
    %v448 = vmul.f32 %v445, 1.442695
    %v449 = vpow.pop %v448
    %450 = vadd.xlane.f32.xlu0 %v447
    %v451 = vpop.xlane.xlu0 %450
    %452 = vadd.xlane.f32.xlu0 %v449
    %v453 = vpop.xlane.xlu0 %452
    %v454 = vrcp.pop %v451
    %v455 = vrcp.pop %v453
    %v456 = vmul.f32 %v447, %v454
    %v457 = vmul.f32 %v449, %v455
    %v458 = vtanh.pop %v436
    %v459 = vtanh.pop %v438
    %v460 = vmul.f32 %v254, %v458
    %v461 = vmul.f32 %v255, %v459
    %v462 = vpack.c.bf16 %v309, %v308
    %v463 = vld [vmem:[#allocation10] sm:$0xff]
    %v464 = vld [vmem:[#allocation10 + $0x8] sm:$0xff]
    %v465 = vld [vmem:[#allocation10 + $0x10] sm:$0xff]
    %v466 = vld [vmem:[#allocation10 + $0x18] sm:$0xff]
    %v467 = vld [vmem:[#allocation10 + $0x20] sm:$0xff]
    %v468 = vld [vmem:[#allocation10 + $0x28] sm:$0xff]
    %v469 = vld [vmem:[#allocation10 + $0x30] sm:$0xff]
    %v470 = vld [vmem:[#allocation10 + $0x38] sm:$0xff]
    %v471 = vld [vmem:[#allocation10 + $0x40] sm:$0xff]
    %v472 = vld [vmem:[#allocation10 + $0x48] sm:$0xff]
    %v473 = vld [vmem:[#allocation10 + $0x50] sm:$0xff]
    %v474 = vld [vmem:[#allocation10 + $0x58] sm:$0xff]
    %v475 = vld [vmem:[#allocation10 + $0x60] sm:$0xff]
    %v476 = vld [vmem:[#allocation10 + $0x68] sm:$0xff]
    %v477 = vld [vmem:[#allocation10 + $0x70] sm:$0xff]
    %v478 = vld [vmem:[#allocation10 + $0x78] sm:$0xff]
    %v480 = vperm.slane %v123, 0
    %v481 = vperm.slane %v123, 1
    %v500 = vunpack.c.l.b16 %v463
    %v501 = vunpack.c.h.b16 %v463
    %v502 = vunpack.c.l.b16 %v464
    %v503 = vunpack.c.h.b16 %v464
    %v504 = vunpack.c.l.b16 %v465
    %v505 = vunpack.c.h.b16 %v465
    %v506 = vunpack.c.l.b16 %v466
    %v507 = vunpack.c.h.b16 %v466
    %v508 = vunpack.c.l.b16 %v467
    %v509 = vunpack.c.h.b16 %v467
    %v510 = vunpack.c.l.b16 %v468
    %v511 = vunpack.c.h.b16 %v468
    %v512 = vunpack.c.l.b16 %v469
    %v513 = vunpack.c.h.b16 %v469
    %v514 = vunpack.c.l.b16 %v470
    %v515 = vunpack.c.h.b16 %v470
    %v516 = vunpack.c.l.b16 %v471
    %v517 = vunpack.c.h.b16 %v471
    %v518 = vunpack.c.l.b16 %v472
    %v519 = vunpack.c.h.b16 %v472
    %v520 = vunpack.c.l.b16 %v473
    %v521 = vunpack.c.h.b16 %v473
    %v522 = vunpack.c.l.b16 %v474
    %v523 = vunpack.c.h.b16 %v474
    %v524 = vunpack.c.l.b16 %v475
    %v525 = vunpack.c.h.b16 %v475
    %v526 = vunpack.c.l.b16 %v476
    %v527 = vunpack.c.h.b16 %v476
    %v528 = vunpack.c.l.b16 %v477
    %v529 = vunpack.c.h.b16 %v477
    %v530 = vunpack.c.l.b16 %v478
    %v531 = vunpack.c.h.b16 %v478
    %v532 = vpack.c.b16 %v502, %v500
    %v533 = vpack.c.b16 %v503, %v501
    %v534 = vpack.c.b16 %v506, %v504
    %v535 = vpack.c.b16 %v507, %v505
    %v536 = vpack.c.b16 %v510, %v508
    %v537 = vpack.c.b16 %v511, %v509
    %v538 = vpack.c.b16 %v514, %v512
    %v539 = vpack.c.b16 %v515, %v513
    %v540 = vpack.c.b16 %v518, %v516
    %v541 = vpack.c.b16 %v519, %v517
    %v542 = vpack.c.b16 %v522, %v520
    %v543 = vpack.c.b16 %v523, %v521
    %v544 = vpack.c.b16 %v526, %v524
    %v545 = vpack.c.b16 %v527, %v525
    %v546 = vpack.c.b16 %v530, %v528
    %v547 = vpack.c.b16 %v531, %v529
    %564 = vmatpush.bf16.msra.mxu0 %v546
    %565 = vmatpush.bf16.msra.mxu0 %v544
    %566 = vmatpush.bf16.msra.mxu0 %v542
    %567 = vmatpush.bf16.msra.mxu0 %v540
    %568 = vmatpush.bf16.msra.mxu0 %v538
    %569 = vmatpush.bf16.msra.mxu0 %v536
    %570 = vmatpush.bf16.msra.mxu0 %v534
    %571 = vmatpush.bf16.msra.mxu0 %v532
    %572 = vmatmul.bf16.gmra.mxu0 %v462
    %v573 = vpop.f32.mrf.mxu0
    %v574 = vadd.f32 %v480, %v573
    %v575 = vpop.f32.mrf.mxu0
    %v576 = vadd.f32 %v480, %v575
    %577 = vdwg.mxu0
    %578 = vmatpush.bf16.msra.mxu0 %v547
    %579 = vmatpush.bf16.msra.mxu0 %v545
    %580 = vmatpush.bf16.msra.mxu0 %v543
    %581 = vmatpush.bf16.msra.mxu0 %v541
    %582 = vmatpush.bf16.msra.mxu0 %v539
    %583 = vmatpush.bf16.msra.mxu0 %v537
    %584 = vmatpush.bf16.msra.mxu0 %v535
    %585 = vmatpush.bf16.msra.mxu0 %v533
    %586 = vmatmul.bf16.gmra.mxu0 %v462
    %v587 = vpop.f32.mrf.mxu0
    %v588 = vadd.f32 %v481, %v587
    %v589 = vpop.f32.mrf.mxu0
    %v590 = vadd.f32 %v481, %v589
    %591 = vdwg.mxu0
    %592 = vmax.xlane.f32.xlu0 %v574
    %v593 = vpop.xlane.xlu0 %592
    %594 = vmax.xlane.f32.xlu0 %v576
    %v595 = vpop.xlane.xlu0 %594
    %v596 = vsub.f32 %v574, %v593
    %v597 = vsub.f32 %v576, %v595
    %v598 = vmul.f32 %v596, 1.442695
    %v599 = vpow.pop %v598
    %v600 = vmul.f32 %v597, 1.442695
    %v601 = vpow.pop %v600
    %602 = vadd.xlane.f32.xlu0 %v599
    %v603 = vpop.xlane.xlu0 %602
    %604 = vadd.xlane.f32.xlu0 %v601
    %v605 = vpop.xlane.xlu0 %604
    %v606 = vrcp.pop %v603
    %v607 = vrcp.pop %v605
    %v608 = vmul.f32 %v599, %v606
    %v609 = vmul.f32 %v601, %v607
    %v610 = vtanh.pop %v588
    %v611 = vtanh.pop %v590
    %v612 = vmul.f32 %v308, %v610
    %v613 = vmul.f32 %v309, %v611
    %v614 = vmul.f32 %v608, %v460
    %v615 = vmul.f32 %v609, %v461
    %v616 = vmul.f32 %v456, %v612
    %v617 = vmul.f32 %v457, %v613
    %v618 = vsub.f32 %v614, %v616
    %v619 = vsub.f32 %v615, %v617
    %v620 = vmul.f32 %v618, 0.044194173
    %v621 = vmul.f32 %v619, 0.044194173
    %v622 = vadd.f32 %v308, %v620
    %v623 = vadd.f32 %v309, %v621
    %v625 = vperm.slane %v128, 0
    %v627 = vadd.f32 %v622, %v625
    %v628 = vadd.f32 %v623, %v625
    %629 = vst [vmem:[#allocation11] sm:$0xff] %v627
    %630 = vst [vmem:[#allocation11 + $0x8] sm:$0xff] %v628
    // Predicated region
    $region70: #{tpu_custom_call.1} parent=1 // pred_check
      _
    $region71: #{tpu_custom_call.1} parent=1 // pred_check_branch
      %632 = sbr.rel (0) target = $region73
    $region72: #{tpu_custom_call.1} parent=1 // pred_region
      %634 = vsyncadd [#allocation4], 0
      %s635 = sshll.u32 [#allocation11], 4
      %s636 = int_to_ptr.vmem [resolvable:$true] %s635
      %s637 = sshll.u32 %s12, 4
      %s638 = int_to_ptr.hbm [resolvable:$true] %s637
      %643 = dma.vmem_to_hbm [thread:$0]  %s636, 256, %s638, [#allocation4], 128, 128, 8
    $region73: #{tpu_custom_call.1} parent=1 // pred_fallthru
      _
    // Predicated region
    $region74: #{tpu_custom_call.1} parent=1 // pred_check
      _
    $region75: #{tpu_custom_call.1} parent=1 // pred_check_branch
      %645 = sbr.rel (0) target = $region77
    $region76: #{tpu_custom_call.1} parent=1 // pred_region
      %647 = dma.done [#allocation4], 256
    $region77: #{tpu_custom_call.1} parent=1 // pred_fallthru
      _
    %648 = vsyncpa [#allocation3], 1
    %649 = vsyncpa [#allocation6], 1
    %650 = vsyncpa [#allocation9], 1
    %651 = vsyncpa [#allocation4], 1

// kernel: tpu_custom_call.1
$region0: #{tpu_custom_call.1}
  #allocation0 [shape = 'u32[]', space=smem, size = 0x4, offset = 0x4, fixed_abs, tag = 'smem constant byte address 0x4 - core index']
  #allocation1 [shape = 'u32[72,128]{1,0:T(1,128)}', space=vmem, size = 0x9000, scoped, tag = 'internal scratch']
  %s0 = inlined_call_operand.hbm [shape: bf16[16,32], index: 0, kind: input, shape index: {}]
  %s1 = inlined_call_operand.hbm [shape: bf16[32,256], index: 1, kind: input, shape index: {}]
  %s2 = inlined_call_operand.hbm [shape: f32[1,256], index: 2, kind: input, shape index: {}]
  %s3 = inlined_call_operand.hbm [shape: bf16[128,256], index: 3, kind: input, shape index: {}]
  %s4 = inlined_call_operand.vmem [shape: f32[1,256], index: 4, kind: input, shape index: {}]
  %s5 = inlined_call_operand.hbm [shape: bf16[128,256], index: 5, kind: input, shape index: {}]
  %s6 = inlined_call_operand.vmem [shape: f32[1,256], index: 6, kind: input, shape index: {}]
  %s7 = inlined_call_operand.vmem [shape: f32[1,128], index: 7, kind: input, shape index: {}]
  %s8 = inlined_call_operand.vmem [shape: f32[1,128], index: 8, kind: input, shape index: {}]
  %s9 = inlined_call_operand.vmem [shape: f32[1,128], index: 9, kind: input, shape index: {}]
  %s10 = inlined_call_operand.vmem [shape: f32[1,128], index: 10, kind: input, shape index: {}]
  %s11 = inlined_call_operand.vmem [shape: f32[1,128], index: 11, kind: input, shape index: {}]
  %s12 = inlined_call_operand.hbm [shape: f32[16,128], index: 12, kind: output, shape index: {}]
  %s13 = sld [smem:[#allocation0]]
  $region78: #{tpu_custom_call.1} parent=0
    _
  %s15 = ssub.s32 1, %s13
  %s16 = scalar_select 0, %s15, %s13
  $region1: #{tpu_custom_call.1} parent=0
    #allocation2 [shape = 'u8[4096]{0}', space=vmem, size = 0x1000, scoped, tag = 'input window, operand 0, single buffered']
    #allocation3 [shape = 's32[1]{0}', space=sflag, size = 0x4, scoped, tag = 'scoped memory for tpu_custom_call.1']
    #allocation4 [shape = 's32[1]{0}', space=sflag, size = 0x4, scoped, tag = 'scoped memory for tpu_custom_call.1']
    #allocation5 [shape = 'u8[16384]{0}', space=vmem, size = 0x4000, scoped, tag = 'input window, operand 1, single buffered']
    #allocation6 [shape = 's32[1]{0}', space=sflag, size = 0x4, scoped, tag = 'scoped memory for tpu_custom_call.1']
    #allocation7 [shape = 'u8[1024]{0}', space=vmem, size = 0x400, scoped, tag = 'input window, operand 2, single buffered']
    #allocation8 [shape = 'u8[65536]{0}', space=vmem, size = 0x10000, scoped, tag = 'input window, operand 3, single buffered']
    #allocation9 [shape = 's32[1]{0}', space=sflag, size = 0x4, scoped, tag = 'scoped memory for tpu_custom_call.1']
    #allocation10 [shape = 'u8[65536]{0}', space=vmem, size = 0x10000, scoped, tag = 'input window, operand 5, single buffered']
    #allocation11 [shape = 'u8[8192]{0}', space=vmem, size = 0x2000, scoped, tag = 'output window, operand 0, single buffered']
    %17 = vsyncpa [#allocation3], 0
    %18 = vsyncpa [#allocation6], 0
    %19 = vsyncpa [#allocation9], 0
    %20 = vsyncpa [#allocation4], 0
    // Predicated region
    $region2: #{tpu_custom_call.1} parent=1 // pred_check
      _
    $region3: #{tpu_custom_call.1} parent=1 // pred_check_branch
      %22 = sbr.rel (0) target = $region5
    $region4: #{tpu_custom_call.1} parent=1 // pred_region
      %24 = vsyncadd [#allocation3], 0
      %s25 = sshll.u32 %s0, 4
      %s26 = int_to_ptr.hbm [resolvable:$true] %s25
      %s27 = sshll.u32 [#allocation2], 4
      %s28 = int_to_ptr.vmem [resolvable:$true] %s27
      %33 = dma.hbm_to_vmem [thread:$0]  %s26, 128, %s28, [#allocation3], 64, 64, 4
    $region5: #{tpu_custom_call.1} parent=1 // pred_fallthru
      _
    // Predicated region
    $region6: #{tpu_custom_call.1} parent=1 // pred_check
      _
    $region7: #{tpu_custom_call.1} parent=1 // pred_check_branch
      %35 = sbr.rel (0) target = $region9
    $region8: #{tpu_custom_call.1} parent=1 // pred_region
      %37 = vsyncadd [#allocation6], 0
      %s38 = sshll.u32 %s1, 4
      %s39 = int_to_ptr.hbm [resolvable:$true] %s38
      %s40 = sshll.u32 [#allocation5], 4
      %s41 = int_to_ptr.vmem [resolvable:$true] %s40
      %46 = dma.hbm_to_vmem [thread:$0]  %s39, 512, %s41, [#allocation6], 128, 128, 8
    $region9: #{tpu_custom_call.1} parent=1 // pred_fallthru
      _
    // Predicated region
    $region10: #{tpu_custom_call.1} parent=1 // pred_check
      _
    $region11: #{tpu_custom_call.1} parent=1 // pred_check_branch
      %48 = sbr.rel (0) target = $region13
    $region12: #{tpu_custom_call.1} parent=1 // pred_region
      %50 = vsyncadd [#allocation6], 0
      %s52 = sshll.u32 %s2, 4
      %s53 = int_to_ptr.hbm [resolvable:$true] %s52
      %s54 = sshll.u32 [#allocation7], 4
      %s55 = int_to_ptr.vmem [resolvable:$true] %s54
      %57 = dma.hbm_to_vmem [thread:$0]  %s53, 32, %s55, [#allocation6]
    $region13: #{tpu_custom_call.1} parent=1 // pred_fallthru
      _
    // Predicated region
    $region14: #{tpu_custom_call.1} parent=1 // pred_check
      _
    $region15: #{tpu_custom_call.1} parent=1 // pred_check_branch
      %59 = sbr.rel (0) target = $region17
    $region16: #{tpu_custom_call.1} parent=1 // pred_region
      %61 = vsyncadd [#allocation9], 0
      %s62 = sshll.u32 %s3, 4
      %s63 = int_to_ptr.hbm [resolvable:$true] %s62
      %s64 = sshll.u32 [#allocation8], 4
      %s65 = int_to_ptr.vmem [resolvable:$true] %s64
      %70 = dma.hbm_to_vmem [thread:$0]  %s63, 2048, %s65, [#allocation9], 128, 128, 8
    $region17: #{tpu_custom_call.1} parent=1 // pred_fallthru
      _
    // Predicated region
    $region18: #{tpu_custom_call.1} parent=1 // pred_check
      _
    $region19: #{tpu_custom_call.1} parent=1 // pred_check_branch
      %72 = sbr.rel (0) target = $region21
    $region20: #{tpu_custom_call.1} parent=1 // pred_region
      _
    $region21: #{tpu_custom_call.1} parent=1 // pred_fallthru
      _
    // Predicated region
    $region22: #{tpu_custom_call.1} parent=1 // pred_check
      _
    $region23: #{tpu_custom_call.1} parent=1 // pred_check_branch
      %74 = sbr.rel (0) target = $region25
    $region24: #{tpu_custom_call.1} parent=1 // pred_region
      %76 = vsyncadd [#allocation9], 0
      %s77 = sshll.u32 %s5, 4
      %s78 = int_to_ptr.hbm [resolvable:$true] %s77
      %s79 = sshll.u32 [#allocation10], 4
      %s80 = int_to_ptr.vmem [resolvable:$true] %s79
      %85 = dma.hbm_to_vmem [thread:$0]  %s78, 2048, %s80, [#allocation9], 128, 128, 8
    $region25: #{tpu_custom_call.1} parent=1 // pred_fallthru
      _
    // Predicated region
    $region26: #{tpu_custom_call.1} parent=1 // pred_check
      _
    $region27: #{tpu_custom_call.1} parent=1 // pred_check_branch
      %87 = sbr.rel (0) target = $region29
    $region28: #{tpu_custom_call.1} parent=1 // pred_region
      _
    $region29: #{tpu_custom_call.1} parent=1 // pred_fallthru
      _
    // Predicated region
    $region30: #{tpu_custom_call.1} parent=1 // pred_check
      _
    $region31: #{tpu_custom_call.1} parent=1 // pred_check_branch
      %89 = sbr.rel (0) target = $region33
    $region32: #{tpu_custom_call.1} parent=1 // pred_region
      _
    $region33: #{tpu_custom_call.1} parent=1 // pred_fallthru
      _
    // Predicated region
    $region34: #{tpu_custom_call.1} parent=1 // pred_check
      _
    $region35: #{tpu_custom_call.1} parent=1 // pred_check_branch
      %91 = sbr.rel (0) target = $region37
    $region36: #{tpu_custom_call.1} parent=1 // pred_region
      _
    $region37: #{tpu_custom_call.1} parent=1 // pred_fallthru
      _
    // Predicated region
    $region38: #{tpu_custom_call.1} parent=1 // pred_check
      _
    $region39: #{tpu_custom_call.1} parent=1 // pred_check_branch
      %93 = sbr.rel (0) target = $region41
    $region40: #{tpu_custom_call.1} parent=1 // pred_region
      _
    $region41: #{tpu_custom_call.1} parent=1 // pred_fallthru
      _
    // Predicated region
    $region42: #{tpu_custom_call.1} parent=1 // pred_check
      _
    $region43: #{tpu_custom_call.1} parent=1 // pred_check_branch
      %95 = sbr.rel (0) target = $region45
    $region44: #{tpu_custom_call.1} parent=1 // pred_region
      _
    $region45: #{tpu_custom_call.1} parent=1 // pred_fallthru
      _
    // Predicated region
    $region46: #{tpu_custom_call.1} parent=1 // pred_check
      _
    $region47: #{tpu_custom_call.1} parent=1 // pred_check_branch
      %97 = sbr.rel (0) target = $region49
    $region48: #{tpu_custom_call.1} parent=1 // pred_region
      _
    $region49: #{tpu_custom_call.1} parent=1 // pred_fallthru
      _
    // Predicated region
    $region50: #{tpu_custom_call.1} parent=1 // pred_check
      _
    $region51: #{tpu_custom_call.1} parent=1 // pred_check_branch
      %99 = sbr.rel (0) target = $region53
    $region52: #{tpu_custom_call.1} parent=1 // pred_region
      %101 = dma.done [#allocation3], 128
    $region53: #{tpu_custom_call.1} parent=1 // pred_fallthru
      _
    // Predicated region
    $region54: #{tpu_custom_call.1} parent=1 // pred_check
      _
    $region55: #{tpu_custom_call.1} parent=1 // pred_check_branch
      %103 = sbr.rel (0) target = $region57
    $region56: #{tpu_custom_call.1} parent=1 // pred_region
      %105 = dma.done [#allocation6], 512
    $region57: #{tpu_custom_call.1} parent=1 // pred_fallthru
      _
    // Predicated region
    $region58: #{tpu_custom_call.1} parent=1 // pred_check
      _
    $region59: #{tpu_custom_call.1} parent=1 // pred_check_branch
      %107 = sbr.rel (0) target = $region61
    $region60: #{tpu_custom_call.1} parent=1 // pred_region
      %109 = dma.done [#allocation6], 32
    $region61: #{tpu_custom_call.1} parent=1 // pred_fallthru
      _
    // Predicated region
    $region62: #{tpu_custom_call.1} parent=1 // pred_check
      _
    $region63: #{tpu_custom_call.1} parent=1 // pred_check_branch
      %111 = sbr.rel (0) target = $region65
    $region64: #{tpu_custom_call.1} parent=1 // pred_region
      %113 = dma.done [#allocation9], 2048
    $region65: #{tpu_custom_call.1} parent=1 // pred_fallthru
      _
    // Predicated region
    $region66: #{tpu_custom_call.1} parent=1 // pred_check
      _
    $region67: #{tpu_custom_call.1} parent=1 // pred_check_branch
      %115 = sbr.rel (0) target = $region69
    $region68: #{tpu_custom_call.1} parent=1 // pred_region
      %117 = dma.done [#allocation9], 2048
    $region69: #{tpu_custom_call.1} parent=1 // pred_fallthru
      _
    %v119 = vld [vmem:[#allocation2] sm:$0xf]
    %v120 = vld [vmem:[#allocation2 + $0x4] sm:$0xf]
    %v121 = vld [vmem:[#allocation7] sm:$0x3]
    %v122 = vld [vmem:[%s4] sm:$0x3]
    %v123 = vld [vmem:[%s6] sm:$0x3]
    %v124 = vld [vmem:[%s7] sm:$0x1]
    %v125 = vld [vmem:[%s8] sm:$0x1]
    %v126 = vld [vmem:[%s9] sm:$0x1]
    %v127 = vld [vmem:[%s10] sm:$0x1]
    %v128 = vld [vmem:[%s11] sm:$0x1]
    %v129 = vld [vmem:[#allocation5] sm:$0xff]
    %v130 = vld [vmem:[#allocation5 + $0x8] sm:$0xff]
    %v131 = vld [vmem:[#allocation5 + $0x10] sm:$0xff]
    %v132 = vld [vmem:[#allocation5 + $0x18] sm:$0xff]
    %v134 = vperm.slane %v121, 0
    %v135 = vperm.slane %v121, 1
    %v140 = vunpack.c.l.b16 %v119
    %v141 = vunpack.c.l.b16 %v120
    %v142 = vpack.c.b16 %v141, %v140
    %v147 = vunpack.c.l.b16 %v129
    %v148 = vunpack.c.h.b16 %v129
    %v149 = vunpack.c.l.b16 %v130
    %v150 = vunpack.c.h.b16 %v130
    %v151 = vunpack.c.l.b16 %v131
    %v152 = vunpack.c.h.b16 %v131
    %v153 = vunpack.c.l.b16 %v132
    %v154 = vunpack.c.h.b16 %v132
    %v155 = vpack.c.b16 %v149, %v147
    %v156 = vpack.c.b16 %v150, %v148
    %v157 = vpack.c.b16 %v153, %v151
    %v158 = vpack.c.b16 %v154, %v152
    %vm163 = vcmask 261120
    %v165 = vsel %vm163, %v142, 0
    %167 = vmatpush.bf16.msra.mxu0 0
    %168 = vmatpush.bf16.msra.mxu0 0
    %169 = vmatpush.bf16.msra.mxu0 0
    %170 = vmatpush.bf16.msra.mxu0 0
    %171 = vmatpush.bf16.msra.mxu0 0
    %172 = vmatpush.bf16.msra.mxu0 0
    %173 = vmatpush.bf16.msra.mxu0 %v157
    %174 = vmatpush.bf16.msra.mxu0 %v155
    %175 = vmatmul.bf16.gmra.mxu0 %v165
    %v176 = vpop.f32.mrf.mxu0
    %v177 = vadd.f32 %v134, %v176
    %v178 = vpop.f32.mrf.mxu0
    %v179 = vadd.f32 %v134, %v178
    %180 = vdwg.mxu0
    %181 = vmatpush.bf16.msra.mxu0 0
    %182 = vmatpush.bf16.msra.mxu0 0
    %183 = vmatpush.bf16.msra.mxu0 0
    %184 = vmatpush.bf16.msra.mxu0 0
    %185 = vmatpush.bf16.msra.mxu0 0
    %186 = vmatpush.bf16.msra.mxu0 0
    %187 = vmatpush.bf16.msra.mxu0 %v158
    %188 = vmatpush.bf16.msra.mxu0 %v156
    %189 = vmatmul.bf16.gmra.mxu0 %v165
    %v190 = vpop.f32.mrf.mxu0
    %v191 = vadd.f32 %v135, %v190
    %v192 = vpop.f32.mrf.mxu0
    %v193 = vadd.f32 %v135, %v192
    %194 = vdwg.mxu0
    %195 = vadd.xlane.f32.xlu0 %v177
    %v196 = vpop.xlane.xlu0 %195
    %197 = vadd.xlane.f32.xlu0 %v179
    %v198 = vpop.xlane.xlu0 %197
    %v199 = vrcp.pop 128.0
    %v200 = vmul.f32 128.0, %v199
    %v201 = vsub.f32 1.0, %v200
    %v202 = vmul.f32 %v199, %v201
    %v203 = vadd.f32 %v199, %v202
    %vm204 = vweird.f32 %v199
    %v205 = vsel %vm204, %v199, %v203
    %v206 = vmul.f32 %v196, %v205
    %v207 = vmul.f32 %v198, %v205
    %v208 = vsub.f32 %v177, %v206
    %v209 = vsub.f32 %v179, %v207
    %v210 = vmul.f32 %v208, %v208
    %v211 = vmul.f32 %v209, %v209
    %212 = vadd.xlane.f32.xlu0 %v210
    %v213 = vpop.xlane.xlu0 %212
    %214 = vadd.xlane.f32.xlu0 %v211
    %v215 = vpop.xlane.xlu0 %214
    %v216 = vmul.f32 %v213, %v205
    %v217 = vmul.f32 %v215, %v205
    %v218 = vadd.f32 %v216, 1e-05
    %v219 = vadd.f32 %v217, 1e-05
    %v220 = vrsqrt.pop %v218
    %v221 = vmul.f32 %v220, %v218
    %v222 = vmul.f32 %v221, %v220
    %v223 = vmul.f32 0.5, %v222
    %v224 = vsub.f32 1.5, %v223
    %v225 = vmul.f32 %v220, %v224
    %vm226 = vweird.f32 %v218
    %vm227 = vweird.f32 %v220
    %vm228 = vmor %vm226, %vm227
    %v229 = vsel %vm228, %v220, %v225
    %v230 = vrsqrt.pop %v219
    %v231 = vmul.f32 %v230, %v219
    %v232 = vmul.f32 %v231, %v230
    %v233 = vmul.f32 0.5, %v232
    %v234 = vsub.f32 1.5, %v233
    %v235 = vmul.f32 %v230, %v234
    %vm236 = vweird.f32 %v219
    %vm237 = vweird.f32 %v230
    %vm238 = vmor %vm236, %vm237
    %v239 = vsel %vm238, %v230, %v235
    %v240 = vmul.f32 %v208, %v229
    %v241 = vmul.f32 %v209, %v239
    %v243 = vperm.slane %v124, 0
    %v245 = vmul.f32 %v240, %v243
    %v246 = vmul.f32 %v241, %v243
    %v248 = vperm.slane %v125, 0
    %v250 = vadd.f32 %v245, %v248
    %v251 = vadd.f32 %v246, %v248
    %v252 = vmax.f32 %v250, -2.0
    %v253 = vmax.f32 %v251, -2.0
    %v254 = vmin.f32 %v252, 2.0
    %v255 = vmin.f32 %v253, 2.0
    %256 = vadd.xlane.f32.xlu0 %v191
    %v257 = vpop.xlane.xlu0 %256
    %258 = vadd.xlane.f32.xlu0 %v193
    %v259 = vpop.xlane.xlu0 %258
    %v260 = vmul.f32 %v257, %v205
    %v261 = vmul.f32 %v259, %v205
    %v262 = vsub.f32 %v191, %v260
    %v263 = vsub.f32 %v193, %v261
    %v264 = vmul.f32 %v262, %v262
    %v265 = vmul.f32 %v263, %v263
    %266 = vadd.xlane.f32.xlu0 %v264
    %v267 = vpop.xlane.xlu0 %266
    %268 = vadd.xlane.f32.xlu0 %v265
    %v269 = vpop.xlane.xlu0 %268
    %v270 = vmul.f32 %v267, %v205
    %v271 = vmul.f32 %v269, %v205
    %v272 = vadd.f32 %v270, 1e-05
    %v273 = vadd.f32 %v271, 1e-05
    %v274 = vrsqrt.pop %v272
    %v275 = vmul.f32 %v274, %v272
    %v276 = vmul.f32 %v275, %v274
    %v277 = vmul.f32 0.5, %v276
    %v278 = vsub.f32 1.5, %v277
    %v279 = vmul.f32 %v274, %v278
    %vm280 = vweird.f32 %v272
    %vm281 = vweird.f32 %v274
    %vm282 = vmor %vm280, %vm281
    %v283 = vsel %vm282, %v274, %v279
    %v284 = vrsqrt.pop %v273
    %v285 = vmul.f32 %v284, %v273
    %v286 = vmul.f32 %v285, %v284
    %v287 = vmul.f32 0.5, %v286
    %v288 = vsub.f32 1.5, %v287
    %v289 = vmul.f32 %v284, %v288
    %vm290 = vweird.f32 %v273
    %vm291 = vweird.f32 %v284
    %vm292 = vmor %vm290, %vm291
    %v293 = vsel %vm292, %v284, %v289
    %v294 = vmul.f32 %v262, %v283
    %v295 = vmul.f32 %v263, %v293
    %v297 = vperm.slane %v126, 0
    %v299 = vmul.f32 %v294, %v297
    %v300 = vmul.f32 %v295, %v297
    %v302 = vperm.slane %v127, 0
    %v304 = vadd.f32 %v299, %v302
    %v305 = vadd.f32 %v300, %v302
    %v306 = vmax.f32 %v304, -2.0
    %v307 = vmax.f32 %v305, -2.0
    %v308 = vmin.f32 %v306, 2.0
    %v309 = vmin.f32 %v307, 2.0
    %v310 = vpack.c.bf16 %v255, %v254
    %v311 = vld [vmem:[#allocation8] sm:$0xff]
    %v312 = vld [vmem:[#allocation8 + $0x8] sm:$0xff]
    %v313 = vld [vmem:[#allocation8 + $0x10] sm:$0xff]
    %v314 = vld [vmem:[#allocation8 + $0x18] sm:$0xff]
    %v315 = vld [vmem:[#allocation8 + $0x20] sm:$0xff]
    %v316 = vld [vmem:[#allocation8 + $0x28] sm:$0xff]
    %v317 = vld [vmem:[#allocation8 + $0x30] sm:$0xff]
    %v318 = vld [vmem:[#allocation8 + $0x38] sm:$0xff]
    %v319 = vld [vmem:[#allocation8 + $0x40] sm:$0xff]
    %v320 = vld [vmem:[#allocation8 + $0x48] sm:$0xff]
    %v321 = vld [vmem:[#allocation8 + $0x50] sm:$0xff]
    %v322 = vld [vmem:[#allocation8 + $0x58] sm:$0xff]
    %v323 = vld [vmem:[#allocation8 + $0x60] sm:$0xff]
    %v324 = vld [vmem:[#allocation8 + $0x68] sm:$0xff]
    %v325 = vld [vmem:[#allocation8 + $0x70] sm:$0xff]
    %v326 = vld [vmem:[#allocation8 + $0x78] sm:$0xff]
    %v328 = vperm.slane %v122, 0
    %v329 = vperm.slane %v122, 1
    %v348 = vunpack.c.l.b16 %v311
    %v349 = vunpack.c.h.b16 %v311
    %v350 = vunpack.c.l.b16 %v312
    %v351 = vunpack.c.h.b16 %v312
    %v352 = vunpack.c.l.b16 %v313
    %v353 = vunpack.c.h.b16 %v313
    %v354 = vunpack.c.l.b16 %v314
    %v355 = vunpack.c.h.b16 %v314
    %v356 = vunpack.c.l.b16 %v315
    %v357 = vunpack.c.h.b16 %v315
    %v358 = vunpack.c.l.b16 %v316
    %v359 = vunpack.c.h.b16 %v316
    %v360 = vunpack.c.l.b16 %v317
    %v361 = vunpack.c.h.b16 %v317
    %v362 = vunpack.c.l.b16 %v318
    %v363 = vunpack.c.h.b16 %v318
    %v364 = vunpack.c.l.b16 %v319
    %v365 = vunpack.c.h.b16 %v319
    %v366 = vunpack.c.l.b16 %v320
    %v367 = vunpack.c.h.b16 %v320
    %v368 = vunpack.c.l.b16 %v321
    %v369 = vunpack.c.h.b16 %v321
    %v370 = vunpack.c.l.b16 %v322
    %v371 = vunpack.c.h.b16 %v322
    %v372 = vunpack.c.l.b16 %v323
    %v373 = vunpack.c.h.b16 %v323
    %v374 = vunpack.c.l.b16 %v324
    %v375 = vunpack.c.h.b16 %v324
    %v376 = vunpack.c.l.b16 %v325
    %v377 = vunpack.c.h.b16 %v325
    %v378 = vunpack.c.l.b16 %v326
    %v379 = vunpack.c.h.b16 %v326
    %v380 = vpack.c.b16 %v350, %v348
    %v381 = vpack.c.b16 %v351, %v349
    %v382 = vpack.c.b16 %v354, %v352
    %v383 = vpack.c.b16 %v355, %v353
    %v384 = vpack.c.b16 %v358, %v356
    %v385 = vpack.c.b16 %v359, %v357
    %v386 = vpack.c.b16 %v362, %v360
    %v387 = vpack.c.b16 %v363, %v361
    %v388 = vpack.c.b16 %v366, %v364
    %v389 = vpack.c.b16 %v367, %v365
    %v390 = vpack.c.b16 %v370, %v368
    %v391 = vpack.c.b16 %v371, %v369
    %v392 = vpack.c.b16 %v374, %v372
    %v393 = vpack.c.b16 %v375, %v373
    %v394 = vpack.c.b16 %v378, %v376
    %v395 = vpack.c.b16 %v379, %v377
    %412 = vmatpush.bf16.msra.mxu0 %v394
    %413 = vmatpush.bf16.msra.mxu0 %v392
    %414 = vmatpush.bf16.msra.mxu0 %v390
    %415 = vmatpush.bf16.msra.mxu0 %v388
    %416 = vmatpush.bf16.msra.mxu0 %v386
    %417 = vmatpush.bf16.msra.mxu0 %v384
    %418 = vmatpush.bf16.msra.mxu0 %v382
    %419 = vmatpush.bf16.msra.mxu0 %v380
    %420 = vmatmul.bf16.gmra.mxu0 %v310
    %v421 = vpop.f32.mrf.mxu0
    %v422 = vadd.f32 %v328, %v421
    %v423 = vpop.f32.mrf.mxu0
    %v424 = vadd.f32 %v328, %v423
    %425 = vdwg.mxu0
    %426 = vmatpush.bf16.msra.mxu0 %v395
    %427 = vmatpush.bf16.msra.mxu0 %v393
    %428 = vmatpush.bf16.msra.mxu0 %v391
    %429 = vmatpush.bf16.msra.mxu0 %v389
    %430 = vmatpush.bf16.msra.mxu0 %v387
    %431 = vmatpush.bf16.msra.mxu0 %v385
    %432 = vmatpush.bf16.msra.mxu0 %v383
    %433 = vmatpush.bf16.msra.mxu0 %v381
    %434 = vmatmul.bf16.gmra.mxu0 %v310
    %v435 = vpop.f32.mrf.mxu0
    %v436 = vadd.f32 %v329, %v435
    %v437 = vpop.f32.mrf.mxu0
    %v438 = vadd.f32 %v329, %v437
    %439 = vdwg.mxu0
    %440 = vmax.xlane.f32.xlu0 %v422
    %v441 = vpop.xlane.xlu0 %440
    %442 = vmax.xlane.f32.xlu0 %v424
    %v443 = vpop.xlane.xlu0 %442
    %v444 = vsub.f32 %v422, %v441
    %v445 = vsub.f32 %v424, %v443
    %v446 = vmul.f32 %v444, 1.442695
    %v447 = vpow.pop %v446
    %v448 = vmul.f32 %v445, 1.442695
    %v449 = vpow.pop %v448
    %450 = vadd.xlane.f32.xlu0 %v447
    %v451 = vpop.xlane.xlu0 %450
    %452 = vadd.xlane.f32.xlu0 %v449
    %v453 = vpop.xlane.xlu0 %452
    %v454 = vrcp.pop %v451
    %v455 = vrcp.pop %v453
    %v456 = vmul.f32 %v447, %v454
    %v457 = vmul.f32 %v449, %v455
    %v458 = vtanh.pop %v436
    %v459 = vtanh.pop %v438
    %v460 = vmul.f32 %v254, %v458
    %v461 = vmul.f32 %v255, %v459
    %v462 = vpack.c.bf16 %v309, %v308
    %v463 = vld [vmem:[#allocation10] sm:$0xff]
    %v464 = vld [vmem:[#allocation10 + $0x8] sm:$0xff]
    %v465 = vld [vmem:[#allocation10 + $0x10] sm:$0xff]
    %v466 = vld [vmem:[#allocation10 + $0x18] sm:$0xff]
    %v467 = vld [vmem:[#allocation10 + $0x20] sm:$0xff]
    %v468 = vld [vmem:[#allocation10 + $0x28] sm:$0xff]
    %v469 = vld [vmem:[#allocation10 + $0x30] sm:$0xff]
    %v470 = vld [vmem:[#allocation10 + $0x38] sm:$0xff]
    %v471 = vld [vmem:[#allocation10 + $0x40] sm:$0xff]
    %v472 = vld [vmem:[#allocation10 + $0x48] sm:$0xff]
    %v473 = vld [vmem:[#allocation10 + $0x50] sm:$0xff]
    %v474 = vld [vmem:[#allocation10 + $0x58] sm:$0xff]
    %v475 = vld [vmem:[#allocation10 + $0x60] sm:$0xff]
    %v476 = vld [vmem:[#allocation10 + $0x68] sm:$0xff]
    %v477 = vld [vmem:[#allocation10 + $0x70] sm:$0xff]
    %v478 = vld [vmem:[#allocation10 + $0x78] sm:$0xff]
    %v480 = vperm.slane %v123, 0
    %v481 = vperm.slane %v123, 1
    %v500 = vunpack.c.l.b16 %v463
    %v501 = vunpack.c.h.b16 %v463
    %v502 = vunpack.c.l.b16 %v464
    %v503 = vunpack.c.h.b16 %v464
    %v504 = vunpack.c.l.b16 %v465
    %v505 = vunpack.c.h.b16 %v465
    %v506 = vunpack.c.l.b16 %v466
    %v507 = vunpack.c.h.b16 %v466
    %v508 = vunpack.c.l.b16 %v467
    %v509 = vunpack.c.h.b16 %v467
    %v510 = vunpack.c.l.b16 %v468
    %v511 = vunpack.c.h.b16 %v468
    %v512 = vunpack.c.l.b16 %v469
    %v513 = vunpack.c.h.b16 %v469
    %v514 = vunpack.c.l.b16 %v470
    %v515 = vunpack.c.h.b16 %v470
    %v516 = vunpack.c.l.b16 %v471
    %v517 = vunpack.c.h.b16 %v471
    %v518 = vunpack.c.l.b16 %v472
    %v519 = vunpack.c.h.b16 %v472
    %v520 = vunpack.c.l.b16 %v473
    %v521 = vunpack.c.h.b16 %v473
    %v522 = vunpack.c.l.b16 %v474
    %v523 = vunpack.c.h.b16 %v474
    %v524 = vunpack.c.l.b16 %v475
    %v525 = vunpack.c.h.b16 %v475
    %v526 = vunpack.c.l.b16 %v476
    %v527 = vunpack.c.h.b16 %v476
    %v528 = vunpack.c.l.b16 %v477
    %v529 = vunpack.c.h.b16 %v477
    %v530 = vunpack.c.l.b16 %v478
    %v531 = vunpack.c.h.b16 %v478
    %v532 = vpack.c.b16 %v502, %v500
    %v533 = vpack.c.b16 %v503, %v501
    %v534 = vpack.c.b16 %v506, %v504
    %v535 = vpack.c.b16 %v507, %v505
    %v536 = vpack.c.b16 %v510, %v508
    %v537 = vpack.c.b16 %v511, %v509
    %v538 = vpack.c.b16 %v514, %v512
    %v539 = vpack.c.b16 %v515, %v513
    %v540 = vpack.c.b16 %v518, %v516
    %v541 = vpack.c.b16 %v519, %v517
    %v542 = vpack.c.b16 %v522, %v520
    %v543 = vpack.c.b16 %v523, %v521
    %v544 = vpack.c.b16 %v526, %v524
    %v545 = vpack.c.b16 %v527, %v525
    %v546 = vpack.c.b16 %v530, %v528
    %v547 = vpack.c.b16 %v531, %v529
    %564 = vmatpush.bf16.msra.mxu0 %v546
    %565 = vmatpush.bf16.msra.mxu0 %v544
    %566 = vmatpush.bf16.msra.mxu0 %v542
    %567 = vmatpush.bf16.msra.mxu0 %v540
    %568 = vmatpush.bf16.msra.mxu0 %v538
    %569 = vmatpush.bf16.msra.mxu0 %v536
    %570 = vmatpush.bf16.msra.mxu0 %v534
    %571 = vmatpush.bf16.msra.mxu0 %v532
    %572 = vmatmul.bf16.gmra.mxu0 %v462
    %v573 = vpop.f32.mrf.mxu0
    %v574 = vadd.f32 %v480, %v573
    %v575 = vpop.f32.mrf.mxu0
    %v576 = vadd.f32 %v480, %v575
    %577 = vdwg.mxu0
    %578 = vmatpush.bf16.msra.mxu0 %v547
    %579 = vmatpush.bf16.msra.mxu0 %v545
    %580 = vmatpush.bf16.msra.mxu0 %v543
    %581 = vmatpush.bf16.msra.mxu0 %v541
    %582 = vmatpush.bf16.msra.mxu0 %v539
    %583 = vmatpush.bf16.msra.mxu0 %v537
    %584 = vmatpush.bf16.msra.mxu0 %v535
    %585 = vmatpush.bf16.msra.mxu0 %v533
    %586 = vmatmul.bf16.gmra.mxu0 %v462
    %v587 = vpop.f32.mrf.mxu0
    %v588 = vadd.f32 %v481, %v587
    %v589 = vpop.f32.mrf.mxu0
    %v590 = vadd.f32 %v481, %v589
    %591 = vdwg.mxu0
    %592 = vmax.xlane.f32.xlu0 %v574
    %v593 = vpop.xlane.xlu0 %592
    %594 = vmax.xlane.f32.xlu0 %v576
    %v595 = vpop.xlane.xlu0 %594
    %v596 = vsub.f32 %v574, %v593
    %v597 = vsub.f32 %v576, %v595
    %v598 = vmul.f32 %v596, 1.442695
    %v599 = vpow.pop %v598
    %v600 = vmul.f32 %v597, 1.442695
    %v601 = vpow.pop %v600
    %602 = vadd.xlane.f32.xlu0 %v599
    %v603 = vpop.xlane.xlu0 %602
    %604 = vadd.xlane.f32.xlu0 %v601
    %v605 = vpop.xlane.xlu0 %604
    %v606 = vrcp.pop %v603
    %v607 = vrcp.pop %v605
    %v608 = vmul.f32 %v599, %v606
    %v609 = vmul.f32 %v601, %v607
    %v610 = vtanh.pop %v588
    %v611 = vtanh.pop %v590
    %v612 = vmul.f32 %v308, %v610
    %v613 = vmul.f32 %v309, %v611
    %v614 = vmul.f32 %v608, %v460
    %v615 = vmul.f32 %v609, %v461
    %v616 = vmul.f32 %v456, %v612
    %v617 = vmul.f32 %v457, %v613
    %v618 = vsub.f32 %v614, %v616
    %v619 = vsub.f32 %v615, %v617
    %v620 = vmul.f32 %v618, 0.044194173
    %v621 = vmul.f32 %v619, 0.044194173
    %v622 = vadd.f32 %v308, %v620
    %v623 = vadd.f32 %v309, %v621
    %v625 = vperm.slane %v128, 0
    %v627 = vadd.f32 %v622, %v625
    %v628 = vadd.f32 %v623, %v625
    %629 = vst [vmem:[#allocation11] sm:$0xff] %v627
    %630 = vst [vmem:[#allocation11 + $0x8] sm:$0xff] %v628
    // Predicated region
    $region70: #{tpu_custom_call.1} parent=1 // pred_check
      _
    $region71: #{tpu_custom_call.1} parent=1 // pred_check_branch
      %632 = sbr.rel (0) target = $region73
    $region72: #{tpu_custom_call.1} parent=1 // pred_region
      %634 = vsyncadd [#allocation4], 0
      %s635 = sshll.u32 [#allocation11], 4
      %s636 = int_to_ptr.vmem [resolvable:$true] %s635
      %s637 = sshll.u32 %s12, 4
      %s638 = int_to_ptr.hbm [resolvable:$true] %s637
      %643 = dma.vmem_to_hbm [thread:$0]  %s636, 256, %s638, [#allocation4], 128, 128, 8
    $region73: #{tpu_custom_call.1} parent=1 // pred_fallthru
      _
    // Predicated region
    $region74: #{tpu_custom_call.1} parent=1 // pred_check
      _
    $region75: #{tpu_custom_call.1} parent=1 // pred_check_branch
      %645 = sbr.rel (0) target = $region77
    $region76: #{tpu_custom_call.1} parent=1 // pred_region
      %647 = dma.done [#allocation4], 256
    $region77: #{tpu_custom_call.1} parent=1 // pred_fallthru
      _
    %648 = vsyncpa [#allocation3], 1
    %649 = vsyncpa [#allocation6], 1
    %650 = vsyncpa [#allocation9], 1
    %651 = vsyncpa [#allocation4], 1

</llo_original>
